<compile_context>
chip_gen: v5e
topology: v5e:2x2
jax: 0.10.0
libtpu: 0.0.40
codegen_flags: <defaults>
</compile_context>

<pallas_src>
import functools
import math

import jax
import jax.numpy as jnp
from jax.experimental import pallas as pl
from jax.experimental.pallas import tpu as pltpu


# ----------------------------------------------------------------------------
# Kernel
# ----------------------------------------------------------------------------
def _layernorm(x, w, b, eps=1e-5):
    # Fused-statistics LN: one pass for mean and E[x^2] (halves XLU reductions).
    mu = jnp.mean(x, axis=-1, keepdims=True)
    ms = jnp.mean(x * x, axis=-1, keepdims=True)
    var = ms - mu * mu
    return (x - mu) * jax.lax.rsqrt(var + eps) * w + b


def _transformer_kernel(x_ref,
                        ln1w_ref, ln1b_ref, wqkv_ref, bqkv_ref,
                        wout_ref, bout_ref,
                        ln2w_ref, ln2b_ref, wfc_ref, bfc_ref,
                        wproj_ref, bproj_ref,
                        o_ref, ctx_ref, *, num_heads):
    """One layer of the transformer for one batch tile.

    grid = (batch_tiles, num_layers); layer axis is innermost ("arbitrary").
    x_ref / o_ref : (TB, L, D) f32.  o_ref holds the residual stream and stays
    resident in VMEM across the layer axis.  Weight refs hold the current
    layer's weights (layer dim squeezed out by the BlockSpec).
    ctx_ref : (TB*L, D) bf16 VMEM scratch collecting per-head contexts.
    """
    layer = pl.program_id(1)
    bf16 = jnp.bfloat16

    # Initialize the resident residual stream from the input at layer 0.
    @pl.when(layer == 0)
    def _():
        o_ref[...] = x_ref[...]

    TB, L, D = o_ref.shape
    H = num_heads
    hd = D // H
    R = TB * L

    x = o_ref[...].reshape(R, D)                          # f32 residual stream

    # ---------------- attention branch: x + out_proj(MHA(LN1(x))) -------------
    h = _layernorm(x, ln1w_ref[...], ln1b_ref[...])
    # One wide QKV matmul over all TB*L rows (bf16 in, f32 accumulate), then a
    # single downcast: the head loop slices directly from the bf16 array.
    # The q columns of wqkv/bqkv were pre-scaled by 1/sqrt(hd) on the host.
    qkv = (jnp.dot(h.astype(bf16), wqkv_ref[...],
                   preferred_element_type=jnp.float32)
           + bqkv_ref[...]).astype(bf16)                  # (R, 3D) bf16

    for hh in range(H):                                   # static head loop
        q = qkv[:, hh * hd:(hh + 1) * hd].reshape(TB, L, hd)
        k = qkv[:, D + hh * hd:D + (hh + 1) * hd].reshape(TB, L, hd)
        v = qkv[:, 2 * D + hh * hd:2 * D + (hh + 1) * hd].reshape(TB, L, hd)
        # Batched over the batch tile; contraction on the last dim (no .T).
        s = jnp.einsum('bld,bmd->blm', q, k,
                       preferred_element_type=jnp.float32)            # (TB, L, L)
        s = s - jnp.max(s, axis=-1, keepdims=True)
        p = jnp.exp(s)
        denom = jnp.sum(p, axis=-1, keepdims=True)                     # (TB, L, 1)
        ctx = jnp.einsum('blm,bmd->bld', p.astype(bf16), v,
                         preferred_element_type=jnp.float32)           # (TB, L, hd)
        # Normalize AFTER the PV matmul: scale (TB,L,hd), not (TB,L,L).
        ctx = ctx * pl.reciprocal(denom, approx=True)
        # Stash this head's context into the bf16 scratch buffer; the single
        # K=D out-projection matmul happens after the loop.
        ctx_ref[:, hh * hd:(hh + 1) * hd] = ctx.reshape(R, hd).astype(bf16)

    attn = jnp.dot(ctx_ref[...], wout_ref[...],
                   preferred_element_type=jnp.float32)                 # (R, D)
    x = x + attn + bout_ref[...]

    # ---------------- MLP branch: x + c_proj(QuickGELU(c_fc(LN2(x)))) ---------
    h2 = _layernorm(x, ln2w_ref[...], ln2b_ref[...])
    u = (jnp.dot(h2.astype(bf16), wfc_ref[...],
                 preferred_element_type=jnp.float32)
         + bfc_ref[...]).astype(bf16)                     # (R, 4D) bf16
    g = u * jax.nn.sigmoid(1.702 * u)                     # QuickGELU in bf16
    m = jnp.dot(g, wproj_ref[...],
                preferred_element_type=jnp.float32) + bproj_ref[...]

    o_ref[...] = (x + m).reshape(TB, L, D)


# ----------------------------------------------------------------------------
# Host-side parameter preparation (stack layers, fold q scale, cast to bf16)
# ----------------------------------------------------------------------------
def _stack_params(params, num_heads):
    n_layers = len(params)
    D = params[0]['w_qkv'].shape[0]
    hd = D // num_heads
    scale = 1.0 / math.sqrt(hd)
    f32, bf16 = jnp.float32, jnp.bfloat16

    def stack(key):
        return jnp.stack([p[key] for p in params])

    ln1_w = stack('ln1_w').reshape(n_layers, 1, D).astype(f32)
    ln1_b = stack('ln1_b').reshape(n_layers, 1, D).astype(f32)
    ln2_w = stack('ln2_w').reshape(n_layers, 1, D).astype(f32)
    ln2_b = stack('ln2_b').reshape(n_layers, 1, D).astype(f32)

    # Fold the 1/sqrt(hd) q-scale into the first D output columns of W_qkv/b_qkv.
    qscale = jnp.concatenate([jnp.full((D,), scale, f32),
                              jnp.ones((2 * D,), f32)])
    w_qkv = (stack('w_qkv') * qscale[None, None, :]).astype(bf16)        # (Lyr, D, 3D)
    b_qkv = (stack('b_qkv').reshape(n_layers, 1, 3 * D) * qscale).astype(f32)

    w_out = stack('w_out').astype(bf16)                                  # (Lyr, D, D)
    b_out = stack('b_out').reshape(n_layers, 1, D).astype(f32)

    w_fc = stack('w_fc').astype(bf16)                                    # (Lyr, D, 4D)
    b_fc = stack('b_fc').reshape(n_layers, 1, 4 * D).astype(f32)
    w_proj = stack('w_proj').astype(bf16)                                # (Lyr, 4D, D)
    b_proj = stack('b_proj').reshape(n_layers, 1, D).astype(f32)

    return [ln1_w, ln1_b, w_qkv, b_qkv, w_out, b_out,
            ln2_w, ln2_b, w_fc, b_fc, w_proj, b_proj]


# ----------------------------------------------------------------------------
# Tile / VMEM sizing
# ----------------------------------------------------------------------------
def _vmem_budget_bytes():
    """Physical VMEM of the device minus headroom for Mosaic internal scratch."""
    phys = 128 << 20
    try:
        info = pltpu.get_tpu_info()
        cap = getattr(info, "vmem_capacity_bytes", None)
        if cap:
            phys = int(cap)
    except Exception:
        pass
    return max(24 << 20, phys - (12 << 20))


def _pick_batch_tile(N, L, target_rows=640, min_rows=256):
    """Smallest divisor TB of N with TB*L >= target_rows (else all of N), but
    prefer >= 2 batch tiles (v7x megacore sharding) as long as TB*L >= min_rows."""
    divisors = [d for d in range(1, N + 1) if N % d == 0]
    tb = next((d for d in divisors if d * L >= target_rows), N)
    if tb == N and N > 1:
        smaller = [d for d in divisors if d < N and d * L >= min_rows]
        if smaller:
            tb = smaller[-1]
    return tb


def _per_layer_weight_bytes(stacked):
    return sum(math.prod(a.shape[1:]) * a.dtype.itemsize for a in stacked)


def _vmem_estimate_bytes(stacked, TB, L, D):
    R = TB * L
    w = 2 * _per_layer_weight_bytes(stacked)          # double-buffered layer weights
    io = TB * L * D * 4
    blocks = 2 * io + 2 * io                          # x input + o output, 2-deep
    scratch = R * D * 2                               # bf16 per-head ctx buffer
    temps = R * (3 * D * 2                            # qkv (bf16)
                 + 2 * D * 4                          # LN / attn f32 temporaries
                 + 4 * D * 2                          # GELU intermediate (bf16)
                 + 4 * D * 4)                         # fc f32 accumulate
    temps += 2 * TB * L * L * 4                       # per-head score/prob tiles
    return w + blocks + scratch + temps + (4 << 20)


def _weight_spec(arr):
    """Full-block weight spec, layer dim squeezed, indexed by the layer axis."""
    return pl.BlockSpec((None,) + arr.shape[1:], lambda i, l: (l, 0, 0))


# ----------------------------------------------------------------------------
# Public forward (matches Transformer.forward: x is (L, N, D) -> (L, N, D))
# ----------------------------------------------------------------------------
def transformer_forward(x_lnd, params, num_heads):
    L, N, D = x_lnd.shape
    assert D % num_heads == 0
    num_layers = len(params)
    # TODO(synk): callers that can produce (N, L, D) directly should skip these
    # two HBM relayouts (they cost ~1-2 layers of kernel time for small models).
    x = jnp.transpose(x_lnd, (1, 0, 2))                   # -> (N, L, D)
    stacked = _stack_params(params, num_heads)

    budget = _vmem_budget_bytes()
    TB = _pick_batch_tile(N, L)
    divisors = sorted(d for d in range(1, N + 1) if N % d == 0)
    while TB > 1 and _vmem_estimate_bytes(stacked, TB, L, D) > budget:
        TB = max(d for d in divisors if d < TB)
    nbt = N // TB
    vmem_limit = int(min(budget,
                         max(32 << 20, _vmem_estimate_bytes(stacked, TB, L, D))))

    kern = functools.partial(_transformer_kernel, num_heads=num_heads)

    in_specs = [pl.BlockSpec((TB, L, D), lambda i, l: (i, 0, 0))]
    in_specs += [_weight_spec(a) for a in stacked]

    out = pl.pallas_call(
        kern,
        out_shape=jax.ShapeDtypeStruct((N, L, D), jnp.float32),
        grid_spec=pltpu.PrefetchScalarGridSpec(
            num_scalar_prefetch=0,
            grid=(nbt, num_layers),                        # layer axis innermost
            in_specs=in_specs,
            out_specs=pl.BlockSpec((TB, L, D), lambda i, l: (i, 0, 0)),
            scratch_shapes=[pltpu.VMEM((TB * L, D), jnp.bfloat16)],
        ),
        compiler_params=pltpu.CompilerParams(
            dimension_semantics=("parallel", "arbitrary"),
            vmem_limit_bytes=vmem_limit,
        ),
    )(x, *stacked)
    return jnp.transpose(out, (1, 0, 2))                  # -> (L, N, D)


# ----------------------------------------------------------------------------
# Deterministic parameter init (synthetic; shapes follow the nn.Module)
# ----------------------------------------------------------------------------
def init_transformer_params(key, width, layers):
    params = []
    f32 = jnp.float32
    for i in range(layers):
        ks = jax.random.split(jax.random.fold_in(key, i), 8)
        p = dict(
            ln1_w=jnp.ones((width,), f32),
            ln1_b=jnp.zeros((width,), f32),
            # stored already transposed: y = x @ W + b
            w_qkv=(0.02 * jax.random.normal(ks[0], (width, 3 * width))).astype(f32),
            b_qkv=(0.01 * jax.random.normal(ks[1], (3 * width,))).astype(f32),
            w_out=(0.02 * jax.random.normal(ks[2], (width, width))).astype(f32),
            b_out=(0.01 * jax.random.normal(ks[3], (width,))).astype(f32),
            ln2_w=jnp.ones((width,), f32),
            ln2_b=jnp.zeros((width,), f32),
            w_fc=(0.02 * jax.random.normal(ks[4], (width, 4 * width))).astype(f32),
            b_fc=(0.01 * jax.random.normal(ks[5], (4 * width,))).astype(f32),
            w_proj=(0.02 * jax.random.normal(ks[6], (4 * width, width))).astype(f32),
            b_proj=(0.01 * jax.random.normal(ks[7], (width,))).astype(f32),
        )
        params.append(p)
    return params


# ----------------------------------------------------------------------------
# Pure-JAX f32 reference (same math as torch module) for a correctness check
# ----------------------------------------------------------------------------
def _ref_block(x, p, num_heads):                          # x: (L, N, D)
    L, N, D = x.shape
    hd = D // num_heads

    def ln(t, w, b):
        mu = t.mean(-1, keepdims=True)
        var = ((t - mu) ** 2).mean(-1, keepdims=True)
        return (t - mu) / jnp.sqrt(var + 1e-5) * w + b

    h = ln(x, p['ln1_w'], p['ln1_b'])
    qkv = h @ p['w_qkv'] + p['b_qkv']
    q, k, v = jnp.split(qkv, 3, axis=-1)
    q = q.reshape(L, N, num_heads, hd) / math.sqrt(hd)
    k = k.reshape(L, N, num_heads, hd)
    v = v.reshape(L, N, num_heads, hd)
    s = jnp.einsum('lnhd,mnhd->nhlm', q, k)
    a = jax.nn.softmax(s, axis=-1)
    o = jnp.einsum('nhlm,mnhd->lnhd', a, v).reshape(L, N, D)
    x = x + (o @ p['w_out'] + p['b_out'])
    h2 = ln(x, p['ln2_w'], p['ln2_b'])
    u = h2 @ p['w_fc'] + p['b_fc']
    u = u * jax.nn.sigmoid(1.702 * u)
    return x + (u @ p['w_proj'] + p['b_proj'])


def _ref_transformer(x, params, num_heads):
    for p in params:
        x = _ref_block(x, p, num_heads)
    return x


# ----------------------------------------------------------------------------
if __name__ == "__main__":
    WIDTH, LAYERS, HEADS = 32, 2, 4
    SEQ, BATCH = 8, 2

    key = jax.random.PRNGKey(0)
    x = jax.random.normal(jax.random.fold_in(key, 123),
                          (SEQ, BATCH, WIDTH), dtype=jnp.float32)   # (L, N, D)
    params = init_transformer_params(key, WIDTH, LAYERS)

    out = transformer_forward(x, params, HEADS)
    out = jax.block_until_ready(out)

    ref = _ref_transformer(x, params, HEADS)
    assert out.shape == (SEQ, BATCH, WIDTH)
    err = float(jnp.max(jnp.abs(out - ref)))
    # bf16 weights / matmul inputs / intermediates with f32 accumulation.
    assert jnp.allclose(out, ref, atol=2e-2, rtol=2e-2), f"max abs err {err}"

    print("KERNEL_OK")
</pallas_src>

<mosaic_0001>
module attributes {stable_mosaic.version = 11 : i64} {
  func.func @_transformer_kernel(%arg0: i32, %arg1: i32, %arg2: memref<2x8x32xf32, #tpu.memory_space<vmem>>, %arg3: memref<1x1x32xf32, #tpu.memory_space<vmem>>, %arg4: memref<1x1x32xf32, #tpu.memory_space<vmem>>, %arg5: memref<1x32x96xbf16, #tpu.memory_space<vmem>>, %arg6: memref<1x1x96xf32, #tpu.memory_space<vmem>>, %arg7: memref<1x32x32xbf16, #tpu.memory_space<vmem>>, %arg8: memref<1x1x32xf32, #tpu.memory_space<vmem>>, %arg9: memref<1x1x32xf32, #tpu.memory_space<vmem>>, %arg10: memref<1x1x32xf32, #tpu.memory_space<vmem>>, %arg11: memref<1x32x128xbf16, #tpu.memory_space<vmem>>, %arg12: memref<1x1x128xf32, #tpu.memory_space<vmem>>, %arg13: memref<1x128x32xbf16, #tpu.memory_space<vmem>>, %arg14: memref<1x1x32xf32, #tpu.memory_space<vmem>>, %arg15: memref<2x8x32xf32, #tpu.memory_space<vmem>>, %arg16: memref<16x32xbf16, #tpu.memory_space<vmem>>) attributes {dimension_semantics = [#tpu.dimension_semantics<parallel>, #tpu.dimension_semantics<arbitrary>], iteration_bounds = array<i64: 1, 2>, scalar_prefetch = 0 : i64, scratch_operands = 1 : i64, tpu.core_type = #tpu.core_type<tc>, window_params = [{transform_indices = @transform_0, window_bounds = array<i64: 2, 8, 32>}, {transform_indices = @transform_1, window_bounds = array<i64: 1, 1, 32>}, {transform_indices = @transform_2, window_bounds = array<i64: 1, 1, 32>}, {transform_indices = @transform_3, window_bounds = array<i64: 1, 32, 96>}, {transform_indices = @transform_4, window_bounds = array<i64: 1, 1, 96>}, {transform_indices = @transform_5, window_bounds = array<i64: 1, 32, 32>}, {transform_indices = @transform_6, window_bounds = array<i64: 1, 1, 32>}, {transform_indices = @transform_7, window_bounds = array<i64: 1, 1, 32>}, {transform_indices = @transform_8, window_bounds = array<i64: 1, 1, 32>}, {transform_indices = @transform_9, window_bounds = array<i64: 1, 32, 128>}, {transform_indices = @transform_10, window_bounds = array<i64: 1, 1, 128>}, {transform_indices = @transform_11, window_bounds = array<i64: 1, 128, 32>}, {transform_indices = @transform_12, window_bounds = array<i64: 1, 1, 32>}, {transform_indices = @transform_13, window_bounds = array<i64: 2, 8, 32>}]} {
    %c0_i32 = arith.constant 0 : i32
    %0 = arith.cmpi eq, %arg1, %c0_i32 : i32
    %1 = arith.extui %0 : i1 to i32
    %c0_i32_0 = arith.constant 0 : i32
    %2 = arith.cmpi ne, %1, %c0_i32_0 : i32
    scf.if %2 {
      %c0_80 = arith.constant 0 : index
      %c0_81 = arith.constant 0 : index
      %c0_82 = arith.constant 0 : index
      %190 = vector.load %arg2[%c0_80, %c0_81, %c0_82] : memref<2x8x32xf32, #tpu.memory_space<vmem>>, vector<2x8x32xf32>
      %c0_83 = arith.constant 0 : index
      %c0_84 = arith.constant 0 : index
      %c0_85 = arith.constant 0 : index
      %191 = vector.load %arg15[%c0_83, %c0_84, %c0_85] : memref<2x8x32xf32, #tpu.memory_space<vmem>>, vector<2x8x32xf32>
      tpu.vector_store %arg15[%c0_83, %c0_84, %c0_85], %190 {strides = array<i32>} : memref<2x8x32xf32, #tpu.memory_space<vmem>>, vector<2x8x32xf32>,
    } else {
    }
    %c0 = arith.constant 0 : index
    %c0_1 = arith.constant 0 : index
    %c0_2 = arith.constant 0 : index
    %3 = vector.load %arg15[%c0, %c0_1, %c0_2] : memref<2x8x32xf32, #tpu.memory_space<vmem>>, vector<2x8x32xf32>
    %4 = vector.shape_cast %3 : vector<2x8x32xf32> to vector<16x32xf32>
    %c0_3 = arith.constant 0 : index
    %c0_4 = arith.constant 0 : index
    %c0_5 = arith.constant 0 : index
    %5 = vector.load %arg3[%c0_3, %c0_4, %c0_5] : memref<1x1x32xf32, #tpu.memory_space<vmem>>, vector<1x1x32xf32>
    %6 = vector.shape_cast %5 : vector<1x1x32xf32> to vector<1x32xf32>
    %c0_6 = arith.constant 0 : index
    %c0_7 = arith.constant 0 : index
    %c0_8 = arith.constant 0 : index
    %7 = vector.load %arg4[%c0_6, %c0_7, %c0_8] : memref<1x1x32xf32, #tpu.memory_space<vmem>>, vector<1x1x32xf32>
    %8 = vector.shape_cast %7 : vector<1x1x32xf32> to vector<1x32xf32>
    %cst = arith.constant dense<0.000000e+00> : vector<16xf32>
    %9 = vector.multi_reduction <add>, %4, %cst [1] : vector<16x32xf32> to vector<16xf32>
    %10 = vector.shape_cast %9 : vector<16xf32> to vector<16x1xf32>
    %cst_9 = arith.constant 3.200000e+01 : f32
    %11 = vector.broadcast %cst_9 : f32 to vector<16x1xf32>
    %12 = arith.divf %10, %11 : vector<16x1xf32>
    %13 = arith.mulf %4, %4 : vector<16x32xf32>
    %cst_10 = arith.constant dense<0.000000e+00> : vector<16xf32>
    %14 = vector.multi_reduction <add>, %13, %cst_10 [1] : vector<16x32xf32> to vector<16xf32>
    %15 = vector.shape_cast %14 : vector<16xf32> to vector<16x1xf32>
    %cst_11 = arith.constant 3.200000e+01 : f32
    %16 = vector.broadcast %cst_11 : f32 to vector<16x1xf32>
    %17 = arith.divf %15, %16 : vector<16x1xf32>
    %18 = arith.mulf %12, %12 : vector<16x1xf32>
    %19 = arith.subf %17, %18 : vector<16x1xf32>
    %20 = vector.broadcast %12 : vector<16x1xf32> to vector<16x32xf32>
    %21 = arith.subf %4, %20 : vector<16x32xf32>
    %cst_12 = arith.constant 9.99999974E-6 : f32
    %22 = vector.broadcast %cst_12 : f32 to vector<16x1xf32>
    %23 = arith.addf %19, %22 : vector<16x1xf32>
    %24 = math.rsqrt %23 : vector<16x1xf32>
    %25 = vector.broadcast %24 : vector<16x1xf32> to vector<16x32xf32>
    %26 = arith.mulf %21, %25 : vector<16x32xf32>
    %27 = vector.broadcast %6 : vector<1x32xf32> to vector<16x32xf32>
    %28 = arith.mulf %26, %27 : vector<16x32xf32>
    %29 = vector.broadcast %8 : vector<1x32xf32> to vector<16x32xf32>
    %30 = arith.addf %28, %29 : vector<16x32xf32>
    %31 = arith.truncf %30 : vector<16x32xf32> to vector<16x32xbf16>
    %c0_13 = arith.constant 0 : index
    %c0_14 = arith.constant 0 : index
    %c0_15 = arith.constant 0 : index
    %32 = vector.load %arg5[%c0_13, %c0_14, %c0_15] : memref<1x32x96xbf16, #tpu.memory_space<vmem>>, vector<1x32x96xbf16>
    %33 = vector.shape_cast %32 : vector<1x32x96xbf16> to vector<32x96xbf16>
    %cst_16 = arith.constant dense<0.000000e+00> : vector<16x96xf32>
    %34 = tpu.matmul %31, %33, %cst_16 {dimension_numbers = #tpu.dot_dimension_numbers<[1], [0], [0], [1], [0, 0, 1, 1], [], []>} : vector<16x32xbf16>, vector<32x96xbf16>, vector<16x96xf32> -> vector<16x96xf32>
    %c0_17 = arith.constant 0 : index
    %c0_18 = arith.constant 0 : index
    %c0_19 = arith.constant 0 : index
    %35 = vector.load %arg6[%c0_17, %c0_18, %c0_19] : memref<1x1x96xf32, #tpu.memory_space<vmem>>, vector<1x1x96xf32>
    %36 = vector.shape_cast %35 : vector<1x1x96xf32> to vector<1x96xf32>
    %37 = vector.broadcast %36 : vector<1x96xf32> to vector<16x96xf32>
    %38 = arith.addf %34, %37 : vector<16x96xf32>
    %39 = arith.truncf %38 : vector<16x96xf32> to vector<16x96xbf16>
    %40 = vector.extract_strided_slice %39 {offsets = [0, 0], sizes = [16, 8], strides = [1, 1]} : vector<16x96xbf16> to vector<16x8xbf16>
    %41 = vector.shape_cast %40 : vector<16x8xbf16> to vector<2x8x8xbf16>
    %42 = vector.extract_strided_slice %39 {offsets = [0, 32], sizes = [16, 8], strides = [1, 1]} : vector<16x96xbf16> to vector<16x8xbf16>
    %43 = vector.shape_cast %42 : vector<16x8xbf16> to vector<2x8x8xbf16>
    %44 = vector.extract_strided_slice %39 {offsets = [0, 64], sizes = [16, 8], strides = [1, 1]} : vector<16x96xbf16> to vector<16x8xbf16>
    %45 = vector.shape_cast %44 : vector<16x8xbf16> to vector<2x8x8xbf16>
    "tpu.trace_start"() <{level = 10 : i32, message = "bld,bmd->blm"}> : () -> ()
    %cst_20 = arith.constant dense<0.000000e+00> : vector<2x8x8xf32>
    %46 = tpu.matmul %41, %43, %cst_20 {dimension_numbers = #tpu.dot_dimension_numbers<[2], [2], [1], [1], [0, 0, 0, 1, 1, 1], [0], [0]>} : vector<2x8x8xbf16>, vector<2x8x8xbf16>, vector<2x8x8xf32> -> vector<2x8x8xf32>
    "tpu.trace_stop"() : () -> ()
    %cst_21 = arith.constant dense<0xFF800000> : vector<2x8xf32>
    %47 = vector.multi_reduction <maximumf>, %46, %cst_21 [2] : vector<2x8x8xf32> to vector<2x8xf32>
    %48 = vector.shape_cast %47 : vector<2x8xf32> to vector<2x8x1xf32>
    %49 = vector.broadcast %48 : vector<2x8x1xf32> to vector<2x8x8xf32>
    %50 = arith.subf %46, %49 : vector<2x8x8xf32>
    %51 = math.exp %50 : vector<2x8x8xf32>
    %cst_22 = arith.constant dense<0.000000e+00> : vector<2x8xf32>
    %52 = vector.multi_reduction <add>, %51, %cst_22 [2] : vector<2x8x8xf32> to vector<2x8xf32>
    %53 = vector.shape_cast %52 : vector<2x8xf32> to vector<2x8x1xf32>
    %54 = arith.truncf %51 : vector<2x8x8xf32> to vector<2x8x8xbf16>
    "tpu.trace_start"() <{level = 10 : i32, message = "blm,bmd->bld"}> : () -> ()
    %cst_23 = arith.constant dense<0.000000e+00> : vector<2x8x8xf32>
    %55 = tpu.matmul %54, %45, %cst_23 {dimension_numbers = #tpu.dot_dimension_numbers<[2], [1], [1], [2], [0, 0, 0, 1, 1, 2], [0], [0]>} : vector<2x8x8xbf16>, vector<2x8x8xbf16>, vector<2x8x8xf32> -> vector<2x8x8xf32>
    "tpu.trace_stop"() : () -> ()
    %56 = tpu.reciprocal %53 {approx = true} : vector<2x8x1xf32> -> vector<2x8x1xf32>
    %57 = vector.broadcast %56 : vector<2x8x1xf32> to vector<2x8x8xf32>
    %58 = arith.mulf %55, %57 : vector<2x8x8xf32>
    %59 = vector.shape_cast %58 : vector<2x8x8xf32> to vector<16x8xf32>
    %60 = arith.truncf %59 : vector<16x8xf32> to vector<16x8xbf16>
    %c0_24 = arith.constant 0 : index
    %c0_25 = arith.constant 0 : index
    %61 = vector.load %arg16[%c0_24, %c0_25] : memref<16x32xbf16, #tpu.memory_space<vmem>>, vector<16x8xbf16>
    tpu.vector_store %arg16[%c0_24, %c0_25], %60 {strides = array<i32>} : memref<16x32xbf16, #tpu.memory_space<vmem>>, vector<16x8xbf16>,
    %62 = vector.extract_strided_slice %39 {offsets = [0, 8], sizes = [16, 8], strides = [1, 1]} : vector<16x96xbf16> to vector<16x8xbf16>
    %63 = vector.shape_cast %62 : vector<16x8xbf16> to vector<2x8x8xbf16>
    %64 = vector.extract_strided_slice %39 {offsets = [0, 40], sizes = [16, 8], strides = [1, 1]} : vector<16x96xbf16> to vector<16x8xbf16>
    %65 = vector.shape_cast %64 : vector<16x8xbf16> to vector<2x8x8xbf16>
    %66 = vector.extract_strided_slice %39 {offsets = [0, 72], sizes = [16, 8], strides = [1, 1]} : vector<16x96xbf16> to vector<16x8xbf16>
    %67 = vector.shape_cast %66 : vector<16x8xbf16> to vector<2x8x8xbf16>
    "tpu.trace_start"() <{level = 10 : i32, message = "bld,bmd->blm"}> : () -> ()
    %cst_26 = arith.constant dense<0.000000e+00> : vector<2x8x8xf32>
    %68 = tpu.matmul %63, %65, %cst_26 {dimension_numbers = #tpu.dot_dimension_numbers<[2], [2], [1], [1], [0, 0, 0, 1, 1, 1], [0], [0]>} : vector<2x8x8xbf16>, vector<2x8x8xbf16>, vector<2x8x8xf32> -> vector<2x8x8xf32>
    "tpu.trace_stop"() : () -> ()
    %cst_27 = arith.constant dense<0xFF800000> : vector<2x8xf32>
    %69 = vector.multi_reduction <maximumf>, %68, %cst_27 [2] : vector<2x8x8xf32> to vector<2x8xf32>
    %70 = vector.shape_cast %69 : vector<2x8xf32> to vector<2x8x1xf32>
    %71 = vector.broadcast %70 : vector<2x8x1xf32> to vector<2x8x8xf32>
    %72 = arith.subf %68, %71 : vector<2x8x8xf32>
    %73 = math.exp %72 : vector<2x8x8xf32>
    %cst_28 = arith.constant dense<0.000000e+00> : vector<2x8xf32>
    %74 = vector.multi_reduction <add>, %73, %cst_28 [2] : vector<2x8x8xf32> to vector<2x8xf32>
    %75 = vector.shape_cast %74 : vector<2x8xf32> to vector<2x8x1xf32>
    %76 = arith.truncf %73 : vector<2x8x8xf32> to vector<2x8x8xbf16>
    "tpu.trace_start"() <{level = 10 : i32, message = "blm,bmd->bld"}> : () -> ()
    %cst_29 = arith.constant dense<0.000000e+00> : vector<2x8x8xf32>
    %77 = tpu.matmul %76, %67, %cst_29 {dimension_numbers = #tpu.dot_dimension_numbers<[2], [1], [1], [2], [0, 0, 0, 1, 1, 2], [0], [0]>} : vector<2x8x8xbf16>, vector<2x8x8xbf16>, vector<2x8x8xf32> -> vector<2x8x8xf32>
    "tpu.trace_stop"() : () -> ()
    %78 = tpu.reciprocal %75 {approx = true} : vector<2x8x1xf32> -> vector<2x8x1xf32>
    %79 = vector.broadcast %78 : vector<2x8x1xf32> to vector<2x8x8xf32>
    %80 = arith.mulf %77, %79 : vector<2x8x8xf32>
    %81 = vector.shape_cast %80 : vector<2x8x8xf32> to vector<16x8xf32>
    %82 = arith.truncf %81 : vector<16x8xf32> to vector<16x8xbf16>
    %c0_30 = arith.constant 0 : index
    %c8 = arith.constant 8 : index
    %83 = vector.load %arg16[%c0_30, %c8] : memref<16x32xbf16, #tpu.memory_space<vmem>>, vector<16x8xbf16>
    tpu.vector_store %arg16[%c0_30, %c8], %82 {strides = array<i32>} : memref<16x32xbf16, #tpu.memory_space<vmem>>, vector<16x8xbf16>,
    %84 = vector.extract_strided_slice %39 {offsets = [0, 16], sizes = [16, 8], strides = [1, 1]} : vector<16x96xbf16> to vector<16x8xbf16>
    %85 = vector.shape_cast %84 : vector<16x8xbf16> to vector<2x8x8xbf16>
    %86 = vector.extract_strided_slice %39 {offsets = [0, 48], sizes = [16, 8], strides = [1, 1]} : vector<16x96xbf16> to vector<16x8xbf16>
    %87 = vector.shape_cast %86 : vector<16x8xbf16> to vector<2x8x8xbf16>
    %88 = vector.extract_strided_slice %39 {offsets = [0, 80], sizes = [16, 8], strides = [1, 1]} : vector<16x96xbf16> to vector<16x8xbf16>
    %89 = vector.shape_cast %88 : vector<16x8xbf16> to vector<2x8x8xbf16>
    "tpu.trace_start"() <{level = 10 : i32, message = "bld,bmd->blm"}> : () -> ()
    %cst_31 = arith.constant dense<0.000000e+00> : vector<2x8x8xf32>
    %90 = tpu.matmul %85, %87, %cst_31 {dimension_numbers = #tpu.dot_dimension_numbers<[2], [2], [1], [1], [0, 0, 0, 1, 1, 1], [0], [0]>} : vector<2x8x8xbf16>, vector<2x8x8xbf16>, vector<2x8x8xf32> -> vector<2x8x8xf32>
    "tpu.trace_stop"() : () -> ()
    %cst_32 = arith.constant dense<0xFF800000> : vector<2x8xf32>
    %91 = vector.multi_reduction <maximumf>, %90, %cst_32 [2] : vector<2x8x8xf32> to vector<2x8xf32>
    %92 = vector.shape_cast %91 : vector<2x8xf32> to vector<2x8x1xf32>
    %93 = vector.broadcast %92 : vector<2x8x1xf32> to vector<2x8x8xf32>
    %94 = arith.subf %90, %93 : vector<2x8x8xf32>
    %95 = math.exp %94 : vector<2x8x8xf32>
    %cst_33 = arith.constant dense<0.000000e+00> : vector<2x8xf32>
    %96 = vector.multi_reduction <add>, %95, %cst_33 [2] : vector<2x8x8xf32> to vector<2x8xf32>
    %97 = vector.shape_cast %96 : vector<2x8xf32> to vector<2x8x1xf32>
    %98 = arith.truncf %95 : vector<2x8x8xf32> to vector<2x8x8xbf16>
    "tpu.trace_start"() <{level = 10 : i32, message = "blm,bmd->bld"}> : () -> ()
    %cst_34 = arith.constant dense<0.000000e+00> : vector<2x8x8xf32>
    %99 = tpu.matmul %98, %89, %cst_34 {dimension_numbers = #tpu.dot_dimension_numbers<[2], [1], [1], [2], [0, 0, 0, 1, 1, 2], [0], [0]>} : vector<2x8x8xbf16>, vector<2x8x8xbf16>, vector<2x8x8xf32> -> vector<2x8x8xf32>
    "tpu.trace_stop"() : () -> ()
    %100 = tpu.reciprocal %97 {approx = true} : vector<2x8x1xf32> -> vector<2x8x1xf32>
    %101 = vector.broadcast %100 : vector<2x8x1xf32> to vector<2x8x8xf32>
    %102 = arith.mulf %99, %101 : vector<2x8x8xf32>
    %103 = vector.shape_cast %102 : vector<2x8x8xf32> to vector<16x8xf32>
    %104 = arith.truncf %103 : vector<16x8xf32> to vector<16x8xbf16>
    %c0_35 = arith.constant 0 : index
    %c16 = arith.constant 16 : index
    %105 = vector.load %arg16[%c0_35, %c16] : memref<16x32xbf16, #tpu.memory_space<vmem>>, vector<16x8xbf16>
    tpu.vector_store %arg16[%c0_35, %c16], %104 {strides = array<i32>} : memref<16x32xbf16, #tpu.memory_space<vmem>>, vector<16x8xbf16>,
    %106 = vector.extract_strided_slice %39 {offsets = [0, 24], sizes = [16, 8], strides = [1, 1]} : vector<16x96xbf16> to vector<16x8xbf16>
    %107 = vector.shape_cast %106 : vector<16x8xbf16> to vector<2x8x8xbf16>
    %108 = vector.extract_strided_slice %39 {offsets = [0, 56], sizes = [16, 8], strides = [1, 1]} : vector<16x96xbf16> to vector<16x8xbf16>
    %109 = vector.shape_cast %108 : vector<16x8xbf16> to vector<2x8x8xbf16>
    %110 = vector.extract_strided_slice %39 {offsets = [0, 88], sizes = [16, 8], strides = [1, 1]} : vector<16x96xbf16> to vector<16x8xbf16>
    %111 = vector.shape_cast %110 : vector<16x8xbf16> to vector<2x8x8xbf16>
    "tpu.trace_start"() <{level = 10 : i32, message = "bld,bmd->blm"}> : () -> ()
    %cst_36 = arith.constant dense<0.000000e+00> : vector<2x8x8xf32>
    %112 = tpu.matmul %107, %109, %cst_36 {dimension_numbers = #tpu.dot_dimension_numbers<[2], [2], [1], [1], [0, 0, 0, 1, 1, 1], [0], [0]>} : vector<2x8x8xbf16>, vector<2x8x8xbf16>, vector<2x8x8xf32> -> vector<2x8x8xf32>
    "tpu.trace_stop"() : () -> ()
    %cst_37 = arith.constant dense<0xFF800000> : vector<2x8xf32>
    %113 = vector.multi_reduction <maximumf>, %112, %cst_37 [2] : vector<2x8x8xf32> to vector<2x8xf32>
    %114 = vector.shape_cast %113 : vector<2x8xf32> to vector<2x8x1xf32>
    %115 = vector.broadcast %114 : vector<2x8x1xf32> to vector<2x8x8xf32>
    %116 = arith.subf %112, %115 : vector<2x8x8xf32>
    %117 = math.exp %116 : vector<2x8x8xf32>
    %cst_38 = arith.constant dense<0.000000e+00> : vector<2x8xf32>
    %118 = vector.multi_reduction <add>, %117, %cst_38 [2] : vector<2x8x8xf32> to vector<2x8xf32>
    %119 = vector.shape_cast %118 : vector<2x8xf32> to vector<2x8x1xf32>
    %120 = arith.truncf %117 : vector<2x8x8xf32> to vector<2x8x8xbf16>
    "tpu.trace_start"() <{level = 10 : i32, message = "blm,bmd->bld"}> : () -> ()
    %cst_39 = arith.constant dense<0.000000e+00> : vector<2x8x8xf32>
    %121 = tpu.matmul %120, %111, %cst_39 {dimension_numbers = #tpu.dot_dimension_numbers<[2], [1], [1], [2], [0, 0, 0, 1, 1, 2], [0], [0]>} : vector<2x8x8xbf16>, vector<2x8x8xbf16>, vector<2x8x8xf32> -> vector<2x8x8xf32>
    "tpu.trace_stop"() : () -> ()
    %122 = tpu.reciprocal %119 {approx = true} : vector<2x8x1xf32> -> vector<2x8x1xf32>
    %123 = vector.broadcast %122 : vector<2x8x1xf32> to vector<2x8x8xf32>
    %124 = arith.mulf %121, %123 : vector<2x8x8xf32>
    %125 = vector.shape_cast %124 : vector<2x8x8xf32> to vector<16x8xf32>
    %126 = arith.truncf %125 : vector<16x8xf32> to vector<16x8xbf16>
    %c0_40 = arith.constant 0 : index
    %c24 = arith.constant 24 : index
    %127 = vector.load %arg16[%c0_40, %c24] : memref<16x32xbf16, #tpu.memory_space<vmem>>, vector<16x8xbf16>
    tpu.vector_store %arg16[%c0_40, %c24], %126 {strides = array<i32>} : memref<16x32xbf16, #tpu.memory_space<vmem>>, vector<16x8xbf16>,
    %c0_41 = arith.constant 0 : index
    %c0_42 = arith.constant 0 : index
    %128 = vector.load %arg16[%c0_41, %c0_42] : memref<16x32xbf16, #tpu.memory_space<vmem>>, vector<16x32xbf16>
    %c0_43 = arith.constant 0 : index
    %c0_44 = arith.constant 0 : index
    %c0_45 = arith.constant 0 : index
    %129 = vector.load %arg7[%c0_43, %c0_44, %c0_45] : memref<1x32x32xbf16, #tpu.memory_space<vmem>>, vector<1x32x32xbf16>
    %130 = vector.shape_cast %129 : vector<1x32x32xbf16> to vector<32x32xbf16>
    %cst_46 = arith.constant dense<0.000000e+00> : vector<16x32xf32>
    %131 = tpu.matmul %128, %130, %cst_46 {dimension_numbers = #tpu.dot_dimension_numbers<[1], [0], [0], [1], [0, 0, 1, 1], [], []>} : vector<16x32xbf16>, vector<32x32xbf16>, vector<16x32xf32> -> vector<16x32xf32>
    %132 = arith.addf %4, %131 : vector<16x32xf32>
    %c0_47 = arith.constant 0 : index
    %c0_48 = arith.constant 0 : index
    %c0_49 = arith.constant 0 : index
    %133 = vector.load %arg8[%c0_47, %c0_48, %c0_49] : memref<1x1x32xf32, #tpu.memory_space<vmem>>, vector<1x1x32xf32>
    %134 = vector.shape_cast %133 : vector<1x1x32xf32> to vector<1x32xf32>
    %135 = vector.broadcast %134 : vector<1x32xf32> to vector<16x32xf32>
    %136 = arith.addf %132, %135 : vector<16x32xf32>
    %c0_50 = arith.constant 0 : index
    %c0_51 = arith.constant 0 : index
    %c0_52 = arith.constant 0 : index
    %137 = vector.load %arg9[%c0_50, %c0_51, %c0_52] : memref<1x1x32xf32, #tpu.memory_space<vmem>>, vector<1x1x32xf32>
    %138 = vector.shape_cast %137 : vector<1x1x32xf32> to vector<1x32xf32>
    %c0_53 = arith.constant 0 : index
    %c0_54 = arith.constant 0 : index
    %c0_55 = arith.constant 0 : index
    %139 = vector.load %arg10[%c0_53, %c0_54, %c0_55] : memref<1x1x32xf32, #tpu.memory_space<vmem>>, vector<1x1x32xf32>
    %140 = vector.shape_cast %139 : vector<1x1x32xf32> to vector<1x32xf32>
    %cst_56 = arith.constant dense<0.000000e+00> : vector<16xf32>
    %141 = vector.multi_reduction <add>, %136, %cst_56 [1] : vector<16x32xf32> to vector<16xf32>
    %142 = vector.shape_cast %141 : vector<16xf32> to vector<16x1xf32>
    %cst_57 = arith.constant 3.200000e+01 : f32
    %143 = vector.broadcast %cst_57 : f32 to vector<16x1xf32>
    %144 = arith.divf %142, %143 : vector<16x1xf32>
    %145 = arith.mulf %136, %136 : vector<16x32xf32>
    %cst_58 = arith.constant dense<0.000000e+00> : vector<16xf32>
    %146 = vector.multi_reduction <add>, %145, %cst_58 [1] : vector<16x32xf32> to vector<16xf32>
    %147 = vector.shape_cast %146 : vector<16xf32> to vector<16x1xf32>
    %cst_59 = arith.constant 3.200000e+01 : f32
    %148 = vector.broadcast %cst_59 : f32 to vector<16x1xf32>
    %149 = arith.divf %147, %148 : vector<16x1xf32>
    %150 = arith.mulf %144, %144 : vector<16x1xf32>
    %151 = arith.subf %149, %150 : vector<16x1xf32>
    %152 = vector.broadcast %144 : vector<16x1xf32> to vector<16x32xf32>
    %153 = arith.subf %136, %152 : vector<16x32xf32>
    %cst_60 = arith.constant 9.99999974E-6 : f32
    %154 = vector.broadcast %cst_60 : f32 to vector<16x1xf32>
    %155 = arith.addf %151, %154 : vector<16x1xf32>
    %156 = math.rsqrt %155 : vector<16x1xf32>
    %157 = vector.broadcast %156 : vector<16x1xf32> to vector<16x32xf32>
    %158 = arith.mulf %153, %157 : vector<16x32xf32>
    %159 = vector.broadcast %138 : vector<1x32xf32> to vector<16x32xf32>
    %160 = arith.mulf %158, %159 : vector<16x32xf32>
    %161 = vector.broadcast %140 : vector<1x32xf32> to vector<16x32xf32>
    %162 = arith.addf %160, %161 : vector<16x32xf32>
    %163 = arith.truncf %162 : vector<16x32xf32> to vector<16x32xbf16>
    %c0_61 = arith.constant 0 : index
    %c0_62 = arith.constant 0 : index
    %c0_63 = arith.constant 0 : index
    %164 = vector.load %arg11[%c0_61, %c0_62, %c0_63] : memref<1x32x128xbf16, #tpu.memory_space<vmem>>, vector<1x32x128xbf16>
    %165 = vector.shape_cast %164 : vector<1x32x128xbf16> to vector<32x128xbf16>
    %cst_64 = arith.constant dense<0.000000e+00> : vector<16x128xf32>
    %166 = tpu.matmul %163, %165, %cst_64 {dimension_numbers = #tpu.dot_dimension_numbers<[1], [0], [0], [1], [0, 0, 1, 1], [], []>} : vector<16x32xbf16>, vector<32x128xbf16>, vector<16x128xf32> -> vector<16x128xf32>
    %c0_65 = arith.constant 0 : index
    %c0_66 = arith.constant 0 : index
    %c0_67 = arith.constant 0 : index
    %167 = vector.load %arg12[%c0_65, %c0_66, %c0_67] : memref<1x1x128xf32, #tpu.memory_space<vmem>>, vector<1x1x128xf32>
    %168 = vector.shape_cast %167 : vector<1x1x128xf32> to vector<1x128xf32>
    %169 = vector.broadcast %168 : vector<1x128xf32> to vector<16x128xf32>
    %170 = arith.addf %166, %169 : vector<16x128xf32>
    %171 = arith.truncf %170 : vector<16x128xf32> to vector<16x128xbf16>
    %cst_68 = arith.constant 1.703130e+00 : bf16
    %172 = vector.broadcast %cst_68 : bf16 to vector<16x128xbf16>
    %173 = arith.mulf %172, %171 : vector<16x128xbf16>
    %174 = arith.negf %173 : vector<16x128xbf16>
    %175 = math.exp %174 : vector<16x128xbf16>
    %cst_69 = arith.constant 1.000000e+00 : bf16
    %176 = vector.broadcast %cst_69 : bf16 to vector<16x128xbf16>
    %177 = arith.addf %176, %175 : vector<16x128xbf16>
    %178 = arith.divf %176, %177 : vector<16x128xbf16>
    %179 = arith.mulf %171, %178 : vector<16x128xbf16>
    %c0_70 = arith.constant 0 : index
    %c0_71 = arith.constant 0 : index
    %c0_72 = arith.constant 0 : index
    %180 = vector.load %arg13[%c0_70, %c0_71, %c0_72] : memref<1x128x32xbf16, #tpu.memory_space<vmem>>, vector<1x128x32xbf16>
    %181 = vector.shape_cast %180 : vector<1x128x32xbf16> to vector<128x32xbf16>
    %cst_73 = arith.constant dense<0.000000e+00> : vector<16x32xf32>
    %182 = tpu.matmul %179, %181, %cst_73 {dimension_numbers = #tpu.dot_dimension_numbers<[1], [0], [0], [1], [0, 0, 1, 1], [], []>} : vector<16x128xbf16>, vector<128x32xbf16>, vector<16x32xf32> -> vector<16x32xf32>
    %c0_74 = arith.constant 0 : index
    %c0_75 = arith.constant 0 : index
    %c0_76 = arith.constant 0 : index
    %183 = vector.load %arg14[%c0_74, %c0_75, %c0_76] : memref<1x1x32xf32, #tpu.memory_space<vmem>>, vector<1x1x32xf32>
    %184 = vector.shape_cast %183 : vector<1x1x32xf32> to vector<1x32xf32>
    %185 = vector.broadcast %184 : vector<1x32xf32> to vector<16x32xf32>
    %186 = arith.addf %182, %185 : vector<16x32xf32>
    %187 = arith.addf %136, %186 : vector<16x32xf32>
    %188 = vector.shape_cast %187 : vector<16x32xf32> to vector<2x8x32xf32>
    %c0_77 = arith.constant 0 : index
    %c0_78 = arith.constant 0 : index
    %c0_79 = arith.constant 0 : index
    %189 = vector.load %arg15[%c0_77, %c0_78, %c0_79] : memref<2x8x32xf32, #tpu.memory_space<vmem>>, vector<2x8x32xf32>
    tpu.vector_store %arg15[%c0_77, %c0_78, %c0_79], %188 {strides = array<i32>} : memref<2x8x32xf32, #tpu.memory_space<vmem>>, vector<2x8x32xf32>,
    return
  }
  func.func @transform_0(%arg0: i32, %arg1: i32) -> (i32, i32, i32) {
    %c0_i32 = arith.constant 0 : i32
    %c0_i32_0 = arith.constant 0 : i32
    %c0_i32_1 = arith.constant 0 : i32
    return %arg0, %c0_i32, %c0_i32_0 : i32, i32, i32
  }
  func.func @transform_1(%arg0: i32, %arg1: i32) -> (i32, i32, i32) {
    %c0_i32 = arith.constant 0 : i32
    %c0_i32_0 = arith.constant 0 : i32
    %c0_i32_1 = arith.constant 0 : i32
    return %arg1, %c0_i32, %c0_i32_0 : i32, i32, i32
  }
  func.func @transform_2(%arg0: i32, %arg1: i32) -> (i32, i32, i32) {
    %c0_i32 = arith.constant 0 : i32
    %c0_i32_0 = arith.constant 0 : i32
    %c0_i32_1 = arith.constant 0 : i32
    return %arg1, %c0_i32, %c0_i32_0 : i32, i32, i32
  }
  func.func @transform_3(%arg0: i32, %arg1: i32) -> (i32, i32, i32) {
    %c0_i32 = arith.constant 0 : i32
    %c0_i32_0 = arith.constant 0 : i32
    %c0_i32_1 = arith.constant 0 : i32
    return %arg1, %c0_i32, %c0_i32_0 : i32, i32, i32
  }
  func.func @transform_4(%arg0: i32, %arg1: i32) -> (i32, i32, i32) {
    %c0_i32 = arith.constant 0 : i32
    %c0_i32_0 = arith.constant 0 : i32
    %c0_i32_1 = arith.constant 0 : i32
    return %arg1, %c0_i32, %c0_i32_0 : i32, i32, i32
  }
  func.func @transform_5(%arg0: i32, %arg1: i32) -> (i32, i32, i32) {
    %c0_i32 = arith.constant 0 : i32
    %c0_i32_0 = arith.constant 0 : i32
    %c0_i32_1 = arith.constant 0 : i32
    return %arg1, %c0_i32, %c0_i32_0 : i32, i32, i32
  }
  func.func @transform_6(%arg0: i32, %arg1: i32) -> (i32, i32, i32) {
    %c0_i32 = arith.constant 0 : i32
    %c0_i32_0 = arith.constant 0 : i32
    %c0_i32_1 = arith.constant 0 : i32
    return %arg1, %c0_i32, %c0_i32_0 : i32, i32, i32
  }
  func.func @transform_7(%arg0: i32, %arg1: i32) -> (i32, i32, i32) {
    %c0_i32 = arith.constant 0 : i32
    %c0_i32_0 = arith.constant 0 : i32
    %c0_i32_1 = arith.constant 0 : i32
    return %arg1, %c0_i32, %c0_i32_0 : i32, i32, i32
  }
  func.func @transform_8(%arg0: i32, %arg1: i32) -> (i32, i32, i32) {
    %c0_i32 = arith.constant 0 : i32
    %c0_i32_0 = arith.constant 0 : i32
    %c0_i32_1 = arith.constant 0 : i32
    return %arg1, %c0_i32, %c0_i32_0 : i32, i32, i32
  }
  func.func @transform_9(%arg0: i32, %arg1: i32) -> (i32, i32, i32) {
    %c0_i32 = arith.constant 0 : i32
    %c0_i32_0 = arith.constant 0 : i32
    %c0_i32_1 = arith.constant 0 : i32
    return %arg1, %c0_i32, %c0_i32_0 : i32, i32, i32
  }
  func.func @transform_10(%arg0: i32, %arg1: i32) -> (i32, i32, i32) {
    %c0_i32 = arith.constant 0 : i32
    %c0_i32_0 = arith.constant 0 : i32
    %c0_i32_1 = arith.constant 0 : i32
    return %arg1, %c0_i32, %c0_i32_0 : i32, i32, i32
  }
  func.func @transform_11(%arg0: i32, %arg1: i32) -> (i32, i32, i32) {
    %c0_i32 = arith.constant 0 : i32
    %c0_i32_0 = arith.constant 0 : i32
    %c0_i32_1 = arith.constant 0 : i32
    return %arg1, %c0_i32, %c0_i32_0 : i32, i32, i32
  }
  func.func @transform_12(%arg0: i32, %arg1: i32) -> (i32, i32, i32) {
    %c0_i32 = arith.constant 0 : i32
    %c0_i32_0 = arith.constant 0 : i32
    %c0_i32_1 = arith.constant 0 : i32
    return %arg1, %c0_i32, %c0_i32_0 : i32, i32, i32
  }
  func.func @transform_13(%arg0: i32, %arg1: i32) -> (i32, i32, i32) {
    %c0_i32 = arith.constant 0 : i32
    %c0_i32_0 = arith.constant 0 : i32
    %c0_i32_1 = arith.constant 0 : i32
    return %arg0, %c0_i32, %c0_i32_0 : i32, i32, i32
  }
}

</mosaic_0001>

<llo_original>
// kernel: tpu_custom_call.1
$region0: #{tpu_custom_call.1}
  #allocation0 [shape = 'u32[]', space=smem, size = 0x4, offset = 0x4, fixed_abs, tag = 'smem constant byte address 0x4 - core index']
  #allocation1 [shape = 'u32[72,128]{1,0:T(1,128)}', space=vmem, size = 0x9000, scoped, tag = 'internal scratch']
  #allocation2 [shape = 'bf16[16,32]{1,0:T(8,128)(2,1)}', space=vmem, size = 0x1000, scoped, tag = 'scratch operand']
  %s0 = inlined_call_operand.vmem [shape: f32[2,8,32], index: 0, kind: input, shape index: {}]
  %s1 = inlined_call_operand.vmem [shape: f32[2,1,32], index: 1, kind: input, shape index: {}]
  %s2 = inlined_call_operand.vmem [shape: f32[2,1,32], index: 2, kind: input, shape index: {}]
  %s3 = inlined_call_operand.vmem [shape: bf16[2,32,96], index: 3, kind: input, shape index: {}]
  %s4 = inlined_call_operand.vmem [shape: f32[2,1,96], index: 4, kind: input, shape index: {}]
  %s5 = inlined_call_operand.vmem [shape: bf16[2,32,32], index: 5, kind: input, shape index: {}]
  %s6 = inlined_call_operand.vmem [shape: f32[2,1,32], index: 6, kind: input, shape index: {}]
  %s7 = inlined_call_operand.vmem [shape: f32[2,1,32], index: 7, kind: input, shape index: {}]
  %s8 = inlined_call_operand.vmem [shape: f32[2,1,32], index: 8, kind: input, shape index: {}]
  %s9 = inlined_call_operand.vmem [shape: bf16[2,32,128], index: 9, kind: input, shape index: {}]
  %s10 = inlined_call_operand.vmem [shape: f32[2,1,128], index: 10, kind: input, shape index: {}]
  %s11 = inlined_call_operand.vmem [shape: bf16[2,128,32], index: 11, kind: input, shape index: {}]
  %s12 = inlined_call_operand.vmem [shape: f32[2,1,32], index: 12, kind: input, shape index: {}]
  %s13 = inlined_call_operand.hbm [shape: f32[2,8,32], index: 13, kind: output, shape index: {}]
  %s14 = sld [smem:[#allocation0]]
  $region89: #{tpu_custom_call.1} parent=0
    _
  %s16 = ssub.s32 1, %s14
  %s17 = scalar_select 0, %s16, %s14
  $region1: #{tpu_custom_call.1} parent=0
    #allocation3 [shape = 'u8[8192]{0}', space=vmem, size = 0x2000, scoped, tag = 'output window, operand 0, single buffered']
    #allocation4 [shape = 's32[2]{0}', space=sflag, size = 0x8, scoped, tag = 'scoped memory for tpu_custom_call.1']
    %18 = vsyncpa [#allocation4], 0
    loop: start=0, step=1, limit=4
    $region2: #{tpu_custom_call.1} parent=1 // loop_pre_header
      _
    $region3: #{tpu_custom_call.1} parent=1 // loop_header
      %s20 = sphi 0, %s24
      %p21 = scmp.ge.s32.totalorder %s20, 4
      %s27 = sphi 0, %s39
      %s28 = sphi 0, %s35
      %s29 = sphi 0, %s27
      %s30 = sphi 0, %s28
      %s31 = sphi 0, %s29
      %s32 = sphi 0, %s30
      %s42 = sphi 0, %s44
      %s45 = sphi 0, %s42
      %s46 = sphi 0, %s45
      %s62 = sphi 0, %s46
      %s68 = sphi 0, %s70
      %s71 = sphi 0, %s68
      %s72 = sphi 0, %s71
      %s88 = sphi 0, %s72
      %s94 = sphi 0, %s96
      %s97 = sphi 0, %s94
      %s98 = sphi 0, %s97
      %s114 = sphi 0, %s98
      %s120 = sphi 0, %s122
      %s123 = sphi 0, %s120
      %s124 = sphi 0, %s123
      %s140 = sphi 0, %s124
      %s146 = sphi 0, %s148
      %s149 = sphi 0, %s146
      %s150 = sphi 0, %s149
      %s166 = sphi 0, %s150
      %s172 = sphi 0, %s174
      %s175 = sphi 0, %s172
      %s176 = sphi 0, %s175
      %s192 = sphi 0, %s176
      %s198 = sphi 0, %s200
      %s201 = sphi 0, %s198
      %s202 = sphi 0, %s201
      %s218 = sphi 0, %s202
      %s224 = sphi 0, %s226
      %s227 = sphi 0, %s224
      %s228 = sphi 0, %s227
      %s244 = sphi 0, %s228
      %s250 = sphi 0, %s252
      %s253 = sphi 0, %s250
      %s254 = sphi 0, %s253
      %s270 = sphi 0, %s254
      %s276 = sphi 0, %s278
      %s279 = sphi 0, %s276
      %s280 = sphi 0, %s279
      %s296 = sphi 0, %s280
      %s302 = sphi 0, %s304
      %s305 = sphi 0, %s302
      %s306 = sphi 0, %s305
      %s322 = sphi 0, %s306
      %s328 = sphi 0, %s330
      %s331 = sphi 0, %s328
      %s332 = sphi 0, %s331
      %s348 = sphi 0, %s332
      %s354 = sphi 0, %s356
      %s357 = sphi 0, %s354
      %s358 = sphi 0, %s357
      %s374 = sphi 0, %s358
      %s380 = sphi 0, %s382
      %s383 = sphi 0, %s380
      %s384 = sphi 0, %s383
      %s400 = sphi 0, %s384
    $region4: #{tpu_custom_call.1} parent=1 // loop_header_branch
      %23 = sbr.rel (%p21) target = $region8
    $region5: #{tpu_custom_call.1} parent=1 // loop_body
      %s25 = ssub.s32 %s20, 1
      %s26 = ssub.s32 %s20, 2
      %s33 = sadd.s32 1, %s28
      %p34 = scmp.ge.s32.totalorder %s33, 2
      %s35 = scalar_select %p34, 0, %s33
      %s36 = sadd.s32 1, %s27
      %s37 = scalar_select %p34, %s36, %s27
      %p38 = scmp.ge.s32.totalorder %s37, 1
      %s39 = scalar_select %p38, 0, %s37
      %s40 = ssub.s32 %s27, %s39
      %p41 = scmp.eq.s32.totalorder %s40, 0
      %s43 = sadd.s32 %s42, 1
      %s44 = scalar_select %p41, %s42, %s43
      %p47 = pneg %p41
      %p48 = scmp.eq.s32.totalorder %s20, 1
      %p49 = por %p47, %p48
      %p50 = scmp.ne.s32.totalorder %s42, %s45
      %p51 = scmp.eq.s32.totalorder %s20, 0
      %p52 = por %p50, %p51
      %p53 = scmp.ne.s32.totalorder %s42, %s45
      %p54 = scmp.eq.s32.totalorder %s25, 1
      %p55 = por %p53, %p54
      %p56 = scmp.ne.s32.totalorder %s45, %s46
      %p57 = scmp.eq.s32.totalorder %s25, 0
      %p58 = por %p56, %p57
      %p59 = scmp.ne.s32.totalorder %s45, %s46
      %p60 = scmp.eq.s32.totalorder %s26, 1
      %p61 = por %p59, %p60
      %p63 = scmp.ne.s32.totalorder %s46, %s62
      %p64 = scmp.eq.s32.totalorder %s26, 0
      %p65 = por %p63, %p64
      %s66 = ssub.s32 %s28, %s35
      %p67 = scmp.eq.s32.totalorder %s66, 0
      %s69 = sadd.s32 %s68, 1
      %s70 = scalar_select %p67, %s68, %s69
      %p73 = pneg %p67
      %p74 = scmp.eq.s32.totalorder %s20, 1
      %p75 = por %p73, %p74
      %p76 = scmp.ne.s32.totalorder %s68, %s71
      %p77 = scmp.eq.s32.totalorder %s20, 0
      %p78 = por %p76, %p77
      %p79 = scmp.ne.s32.totalorder %s68, %s71
      %p80 = scmp.eq.s32.totalorder %s25, 1
      %p81 = por %p79, %p80
      %p82 = scmp.ne.s32.totalorder %s71, %s72
      %p83 = scmp.eq.s32.totalorder %s25, 0
      %p84 = por %p82, %p83
      %p85 = scmp.ne.s32.totalorder %s71, %s72
      %p86 = scmp.eq.s32.totalorder %s26, 1
      %p87 = por %p85, %p86
      %p89 = scmp.ne.s32.totalorder %s72, %s88
      %p90 = scmp.eq.s32.totalorder %s26, 0
      %p91 = por %p89, %p90
      %s92 = ssub.s32 %s28, %s35
      %p93 = scmp.eq.s32.totalorder %s92, 0
      %s95 = sadd.s32 %s94, 1
      %s96 = scalar_select %p93, %s94, %s95
      %p99 = pneg %p93
      %p100 = scmp.eq.s32.totalorder %s20, 1
      %p101 = por %p99, %p100
      %p102 = scmp.ne.s32.totalorder %s94, %s97
      %p103 = scmp.eq.s32.totalorder %s20, 0
      %p104 = por %p102, %p103
      %p105 = scmp.ne.s32.totalorder %s94, %s97
      %p106 = scmp.eq.s32.totalorder %s25, 1
      %p107 = por %p105, %p106
      %p108 = scmp.ne.s32.totalorder %s97, %s98
      %p109 = scmp.eq.s32.totalorder %s25, 0
      %p110 = por %p108, %p109
      %p111 = scmp.ne.s32.totalorder %s97, %s98
      %p112 = scmp.eq.s32.totalorder %s26, 1
      %p113 = por %p111, %p112
      %p115 = scmp.ne.s32.totalorder %s98, %s114
      %p116 = scmp.eq.s32.totalorder %s26, 0
      %p117 = por %p115, %p116
      %s118 = ssub.s32 %s28, %s35
      %p119 = scmp.eq.s32.totalorder %s118, 0
      %s121 = sadd.s32 %s120, 1
      %s122 = scalar_select %p119, %s120, %s121
      %p125 = pneg %p119
      %p126 = scmp.eq.s32.totalorder %s20, 1
      %p127 = por %p125, %p126
      %p128 = scmp.ne.s32.totalorder %s120, %s123
      %p129 = scmp.eq.s32.totalorder %s20, 0
      %p130 = por %p128, %p129
      %p131 = scmp.ne.s32.totalorder %s120, %s123
      %p132 = scmp.eq.s32.totalorder %s25, 1
      %p133 = por %p131, %p132
      %p134 = scmp.ne.s32.totalorder %s123, %s124
      %p135 = scmp.eq.s32.totalorder %s25, 0
      %p136 = por %p134, %p135
      %p137 = scmp.ne.s32.totalorder %s123, %s124
      %p138 = scmp.eq.s32.totalorder %s26, 1
      %p139 = por %p137, %p138
      %p141 = scmp.ne.s32.totalorder %s124, %s140
      %p142 = scmp.eq.s32.totalorder %s26, 0
      %p143 = por %p141, %p142
      %s144 = ssub.s32 %s28, %s35
      %p145 = scmp.eq.s32.totalorder %s144, 0
      %s147 = sadd.s32 %s146, 1
      %s148 = scalar_select %p145, %s146, %s147
      %p151 = pneg %p145
      %p152 = scmp.eq.s32.totalorder %s20, 1
      %p153 = por %p151, %p152
      %p154 = scmp.ne.s32.totalorder %s146, %s149
      %p155 = scmp.eq.s32.totalorder %s20, 0
      %p156 = por %p154, %p155
      %p157 = scmp.ne.s32.totalorder %s146, %s149
      %p158 = scmp.eq.s32.totalorder %s25, 1
      %p159 = por %p157, %p158
      %p160 = scmp.ne.s32.totalorder %s149, %s150
      %p161 = scmp.eq.s32.totalorder %s25, 0
      %p162 = por %p160, %p161
      %p163 = scmp.ne.s32.totalorder %s149, %s150
      %p164 = scmp.eq.s32.totalorder %s26, 1
      %p165 = por %p163, %p164
      %p167 = scmp.ne.s32.totalorder %s150, %s166
      %p168 = scmp.eq.s32.totalorder %s26, 0
      %p169 = por %p167, %p168
      %s170 = ssub.s32 %s28, %s35
      %p171 = scmp.eq.s32.totalorder %s170, 0
      %s173 = sadd.s32 %s172, 1
      %s174 = scalar_select %p171, %s172, %s173
      %p177 = pneg %p171
      %p178 = scmp.eq.s32.totalorder %s20, 1
      %p179 = por %p177, %p178
      %p180 = scmp.ne.s32.totalorder %s172, %s175
      %p181 = scmp.eq.s32.totalorder %s20, 0
      %p182 = por %p180, %p181
      %p183 = scmp.ne.s32.totalorder %s172, %s175
      %p184 = scmp.eq.s32.totalorder %s25, 1
      %p185 = por %p183, %p184
      %p186 = scmp.ne.s32.totalorder %s175, %s176
      %p187 = scmp.eq.s32.totalorder %s25, 0
      %p188 = por %p186, %p187
      %p189 = scmp.ne.s32.totalorder %s175, %s176
      %p190 = scmp.eq.s32.totalorder %s26, 1
      %p191 = por %p189, %p190
      %p193 = scmp.ne.s32.totalorder %s176, %s192
      %p194 = scmp.eq.s32.totalorder %s26, 0
      %p195 = por %p193, %p194
      %s196 = ssub.s32 %s28, %s35
      %p197 = scmp.eq.s32.totalorder %s196, 0
      %s199 = sadd.s32 %s198, 1
      %s200 = scalar_select %p197, %s198, %s199
      %p203 = pneg %p197
      %p204 = scmp.eq.s32.totalorder %s20, 1
      %p205 = por %p203, %p204
      %p206 = scmp.ne.s32.totalorder %s198, %s201
      %p207 = scmp.eq.s32.totalorder %s20, 0
      %p208 = por %p206, %p207
      %p209 = scmp.ne.s32.totalorder %s198, %s201
      %p210 = scmp.eq.s32.totalorder %s25, 1
      %p211 = por %p209, %p210
      %p212 = scmp.ne.s32.totalorder %s201, %s202
      %p213 = scmp.eq.s32.totalorder %s25, 0
      %p214 = por %p212, %p213
      %p215 = scmp.ne.s32.totalorder %s201, %s202
      %p216 = scmp.eq.s32.totalorder %s26, 1
      %p217 = por %p215, %p216
      %p219 = scmp.ne.s32.totalorder %s202, %s218
      %p220 = scmp.eq.s32.totalorder %s26, 0
      %p221 = por %p219, %p220
      %s222 = ssub.s32 %s28, %s35
      %p223 = scmp.eq.s32.totalorder %s222, 0
      %s225 = sadd.s32 %s224, 1
      %s226 = scalar_select %p223, %s224, %s225
      %p229 = pneg %p223
      %p230 = scmp.eq.s32.totalorder %s20, 1
      %p231 = por %p229, %p230
      %p232 = scmp.ne.s32.totalorder %s224, %s227
      %p233 = scmp.eq.s32.totalorder %s20, 0
      %p234 = por %p232, %p233
      %p235 = scmp.ne.s32.totalorder %s224, %s227
      %p236 = scmp.eq.s32.totalorder %s25, 1
      %p237 = por %p235, %p236
      %p238 = scmp.ne.s32.totalorder %s227, %s228
      %p239 = scmp.eq.s32.totalorder %s25, 0
      %p240 = por %p238, %p239
      %p241 = scmp.ne.s32.totalorder %s227, %s228
      %p242 = scmp.eq.s32.totalorder %s26, 1
      %p243 = por %p241, %p242
      %p245 = scmp.ne.s32.totalorder %s228, %s244
      %p246 = scmp.eq.s32.totalorder %s26, 0
      %p247 = por %p245, %p246
      %s248 = ssub.s32 %s28, %s35
      %p249 = scmp.eq.s32.totalorder %s248, 0
      %s251 = sadd.s32 %s250, 1
      %s252 = scalar_select %p249, %s250, %s251
      %p255 = pneg %p249
      %p256 = scmp.eq.s32.totalorder %s20, 1
      %p257 = por %p255, %p256
      %p258 = scmp.ne.s32.totalorder %s250, %s253
      %p259 = scmp.eq.s32.totalorder %s20, 0
      %p260 = por %p258, %p259
      %p261 = scmp.ne.s32.totalorder %s250, %s253
      %p262 = scmp.eq.s32.totalorder %s25, 1
      %p263 = por %p261, %p262
      %p264 = scmp.ne.s32.totalorder %s253, %s254
      %p265 = scmp.eq.s32.totalorder %s25, 0
      %p266 = por %p264, %p265
      %p267 = scmp.ne.s32.totalorder %s253, %s254
      %p268 = scmp.eq.s32.totalorder %s26, 1
      %p269 = por %p267, %p268
      %p271 = scmp.ne.s32.totalorder %s254, %s270
      %p272 = scmp.eq.s32.totalorder %s26, 0
      %p273 = por %p271, %p272
      %s274 = ssub.s32 %s28, %s35
      %p275 = scmp.eq.s32.totalorder %s274, 0
      %s277 = sadd.s32 %s276, 1
      %s278 = scalar_select %p275, %s276, %s277
      %p281 = pneg %p275
      %p282 = scmp.eq.s32.totalorder %s20, 1
      %p283 = por %p281, %p282
      %p284 = scmp.ne.s32.totalorder %s276, %s279
      %p285 = scmp.eq.s32.totalorder %s20, 0
      %p286 = por %p284, %p285
      %p287 = scmp.ne.s32.totalorder %s276, %s279
      %p288 = scmp.eq.s32.totalorder %s25, 1
      %p289 = por %p287, %p288
      %p290 = scmp.ne.s32.totalorder %s279, %s280
      %p291 = scmp.eq.s32.totalorder %s25, 0
      %p292 = por %p290, %p291
      %p293 = scmp.ne.s32.totalorder %s279, %s280
      %p294 = scmp.eq.s32.totalorder %s26, 1
      %p295 = por %p293, %p294
      %p297 = scmp.ne.s32.totalorder %s280, %s296
      %p298 = scmp.eq.s32.totalorder %s26, 0
      %p299 = por %p297, %p298
      %s300 = ssub.s32 %s28, %s35
      %p301 = scmp.eq.s32.totalorder %s300, 0
      %s303 = sadd.s32 %s302, 1
      %s304 = scalar_select %p301, %s302, %s303
      %p307 = pneg %p301
      %p308 = scmp.eq.s32.totalorder %s20, 1
      %p309 = por %p307, %p308
      %p310 = scmp.ne.s32.totalorder %s302, %s305
      %p311 = scmp.eq.s32.totalorder %s20, 0
      %p312 = por %p310, %p311
      %p313 = scmp.ne.s32.totalorder %s302, %s305
      %p314 = scmp.eq.s32.totalorder %s25, 1
      %p315 = por %p313, %p314
      %p316 = scmp.ne.s32.totalorder %s305, %s306
      %p317 = scmp.eq.s32.totalorder %s25, 0
      %p318 = por %p316, %p317
      %p319 = scmp.ne.s32.totalorder %s305, %s306
      %p320 = scmp.eq.s32.totalorder %s26, 1
      %p321 = por %p319, %p320
      %p323 = scmp.ne.s32.totalorder %s306, %s322
      %p324 = scmp.eq.s32.totalorder %s26, 0
      %p325 = por %p323, %p324
      %s326 = ssub.s32 %s28, %s35
      %p327 = scmp.eq.s32.totalorder %s326, 0
      %s329 = sadd.s32 %s328, 1
      %s330 = scalar_select %p327, %s328, %s329
      %p333 = pneg %p327
      %p334 = scmp.eq.s32.totalorder %s20, 1
      %p335 = por %p333, %p334
      %p336 = scmp.ne.s32.totalorder %s328, %s331
      %p337 = scmp.eq.s32.totalorder %s20, 0
      %p338 = por %p336, %p337
      %p339 = scmp.ne.s32.totalorder %s328, %s331
      %p340 = scmp.eq.s32.totalorder %s25, 1
      %p341 = por %p339, %p340
      %p342 = scmp.ne.s32.totalorder %s331, %s332
      %p343 = scmp.eq.s32.totalorder %s25, 0
      %p344 = por %p342, %p343
      %p345 = scmp.ne.s32.totalorder %s331, %s332
      %p346 = scmp.eq.s32.totalorder %s26, 1
      %p347 = por %p345, %p346
      %p349 = scmp.ne.s32.totalorder %s332, %s348
      %p350 = scmp.eq.s32.totalorder %s26, 0
      %p351 = por %p349, %p350
      %s352 = ssub.s32 %s28, %s35
      %p353 = scmp.eq.s32.totalorder %s352, 0
      %s355 = sadd.s32 %s354, 1
      %s356 = scalar_select %p353, %s354, %s355
      %p359 = pneg %p353
      %p360 = scmp.eq.s32.totalorder %s20, 1
      %p361 = por %p359, %p360
      %p362 = scmp.ne.s32.totalorder %s354, %s357
      %p363 = scmp.eq.s32.totalorder %s20, 0
      %p364 = por %p362, %p363
      %p365 = scmp.ne.s32.totalorder %s354, %s357
      %p366 = scmp.eq.s32.totalorder %s25, 1
      %p367 = por %p365, %p366
      %p368 = scmp.ne.s32.totalorder %s357, %s358
      %p369 = scmp.eq.s32.totalorder %s25, 0
      %p370 = por %p368, %p369
      %p371 = scmp.ne.s32.totalorder %s357, %s358
      %p372 = scmp.eq.s32.totalorder %s26, 1
      %p373 = por %p371, %p372
      %p375 = scmp.ne.s32.totalorder %s358, %s374
      %p376 = scmp.eq.s32.totalorder %s26, 0
      %p377 = por %p375, %p376
      %s378 = ssub.s32 %s27, %s39
      %p379 = scmp.eq.s32.totalorder %s378, 0
      %s381 = sadd.s32 %s380, 1
      %s382 = scalar_select %p379, %s380, %s381
      %p385 = pneg %p379
      %p386 = scmp.eq.s32.totalorder %s20, 1
      %p387 = por %p385, %p386
      %p388 = scmp.ne.s32.totalorder %s380, %s383
      %p389 = scmp.eq.s32.totalorder %s20, 0
      %p390 = por %p388, %p389
      %p391 = scmp.ne.s32.totalorder %s380, %s383
      %p392 = scmp.eq.s32.totalorder %s25, 1
      %p393 = por %p391, %p392
      %p394 = scmp.ne.s32.totalorder %s383, %s384
      %p395 = scmp.eq.s32.totalorder %s25, 0
      %p396 = por %p394, %p395
      %p397 = scmp.ne.s32.totalorder %s383, %s384
      %p398 = scmp.eq.s32.totalorder %s26, 1
      %p399 = por %p397, %p398
      %p401 = scmp.ne.s32.totalorder %s384, %s400
      %p402 = scmp.eq.s32.totalorder %s26, 0
      %p403 = por %p401, %p402
      %p404 = scmp.le.s32.totalorder 1, %s20
      %p405 = scmp.lt.s32.totalorder %s20, 3
      %p406 = pnand %p404, %p405
      %p407 = pneg %p406
      // Predicated region
      $region9: #{tpu_custom_call.1} parent=5 // pred_check
        _
      $region10: #{tpu_custom_call.1} parent=5 // pred_check_branch
        %409 = sbr.rel (%p406) target = $region12
      $region11: #{tpu_custom_call.1} parent=5 // pred_region
        %s410 = ssub.s32 %s20, 1
        // Predicated region
        $region13: #{tpu_custom_call.1} parent=11 // pred_check
          %p411 = pneg %p58
        $region14: #{tpu_custom_call.1} parent=11 // pred_check_branch
          %413 = sbr.rel (%p411) target = $region16
        $region15: #{tpu_custom_call.1} parent=11 // pred_region
          %s414 = smul.u32 2, %s29
          %p415 = scmp.lt.s32.totalorder %s414, 1
          %s416 = scalar_select %p415, %s414, 1
          %s417 = smul.addr %s416, 8
          %s418 = scalar_lea.vmem %s0, %s417
          %s419 = smul.u32 2, %s29
        $region16: #{tpu_custom_call.1} parent=11 // pred_fallthru
          _
      $region12: #{tpu_custom_call.1} parent=5 // pred_fallthru
        _
      %p420 = scmp.lt.s32.totalorder %s20, 2
      // Predicated region
      $region17: #{tpu_custom_call.1} parent=5 // pred_check
        %p421 = pneg %p420
      $region18: #{tpu_custom_call.1} parent=5 // pred_check_branch
        %423 = sbr.rel (%p421) target = $region20
      $region19: #{tpu_custom_call.1} parent=5 // pred_region
        // Predicated region
        $region21: #{tpu_custom_call.1} parent=19 // pred_check
          %p424 = pneg %p78
        $region22: #{tpu_custom_call.1} parent=19 // pred_check_branch
          %426 = sbr.rel (%p424) target = $region24
        $region23: #{tpu_custom_call.1} parent=19 // pred_region
          %p427 = scmp.lt.s32.totalorder %s28, 1
          %s428 = scalar_select %p427, %s28, 1
          %s429 = scalar_lea.vmem %s1, %s428
        $region24: #{tpu_custom_call.1} parent=19 // pred_fallthru
          _
        // Predicated region
        $region25: #{tpu_custom_call.1} parent=19 // pred_check
          %p430 = pneg %p104
        $region26: #{tpu_custom_call.1} parent=19 // pred_check_branch
          %432 = sbr.rel (%p430) target = $region28
        $region27: #{tpu_custom_call.1} parent=19 // pred_region
          %p433 = scmp.lt.s32.totalorder %s28, 1
          %s434 = scalar_select %p433, %s28, 1
          %s435 = scalar_lea.vmem %s2, %s434
        $region28: #{tpu_custom_call.1} parent=19 // pred_fallthru
          _
        // Predicated region
        $region29: #{tpu_custom_call.1} parent=19 // pred_check
          %p436 = pneg %p130
        $region30: #{tpu_custom_call.1} parent=19 // pred_check_branch
          %438 = sbr.rel (%p436) target = $region32
        $region31: #{tpu_custom_call.1} parent=19 // pred_region
          %p439 = scmp.lt.s32.totalorder %s28, 1
          %s440 = scalar_select %p439, %s28, 1
          %s441 = smul.addr %s440, 4
          %s442 = smul.addr %s441, 4
          %s443 = scalar_lea.vmem %s3, %s442
        $region32: #{tpu_custom_call.1} parent=19 // pred_fallthru
          _
        // Predicated region
        $region33: #{tpu_custom_call.1} parent=19 // pred_check
          %p444 = pneg %p156
        $region34: #{tpu_custom_call.1} parent=19 // pred_check_branch
          %446 = sbr.rel (%p444) target = $region36
        $region35: #{tpu_custom_call.1} parent=19 // pred_region
          %p447 = scmp.lt.s32.totalorder %s28, 1
          %s448 = scalar_select %p447, %s28, 1
          %s449 = scalar_lea.vmem %s4, %s448
        $region36: #{tpu_custom_call.1} parent=19 // pred_fallthru
          _
        // Predicated region
        $region37: #{tpu_custom_call.1} parent=19 // pred_check
          %p450 = pneg %p182
        $region38: #{tpu_custom_call.1} parent=19 // pred_check_branch
          %452 = sbr.rel (%p450) target = $region40
        $region39: #{tpu_custom_call.1} parent=19 // pred_region
          %p453 = scmp.lt.s32.totalorder %s28, 1
          %s454 = scalar_select %p453, %s28, 1
          %s455 = smul.addr %s454, 4
          %s456 = smul.addr %s455, 4
          %s457 = scalar_lea.vmem %s5, %s456
        $region40: #{tpu_custom_call.1} parent=19 // pred_fallthru
          _
        // Predicated region
        $region41: #{tpu_custom_call.1} parent=19 // pred_check
          %p458 = pneg %p208
        $region42: #{tpu_custom_call.1} parent=19 // pred_check_branch
          %460 = sbr.rel (%p458) target = $region44
        $region43: #{tpu_custom_call.1} parent=19 // pred_region
          %p461 = scmp.lt.s32.totalorder %s28, 1
          %s462 = scalar_select %p461, %s28, 1
          %s463 = scalar_lea.vmem %s6, %s462
        $region44: #{tpu_custom_call.1} parent=19 // pred_fallthru
          _
        // Predicated region
        $region45: #{tpu_custom_call.1} parent=19 // pred_check
          %p464 = pneg %p234
        $region46: #{tpu_custom_call.1} parent=19 // pred_check_branch
          %466 = sbr.rel (%p464) target = $region48
        $region47: #{tpu_custom_call.1} parent=19 // pred_region
          %p467 = scmp.lt.s32.totalorder %s28, 1
          %s468 = scalar_select %p467, %s28, 1
          %s469 = scalar_lea.vmem %s7, %s468
        $region48: #{tpu_custom_call.1} parent=19 // pred_fallthru
          _
        // Predicated region
        $region49: #{tpu_custom_call.1} parent=19 // pred_check
          %p470 = pneg %p260
        $region50: #{tpu_custom_call.1} parent=19 // pred_check_branch
          %472 = sbr.rel (%p470) target = $region52
        $region51: #{tpu_custom_call.1} parent=19 // pred_region
          %p473 = scmp.lt.s32.totalorder %s28, 1
          %s474 = scalar_select %p473, %s28, 1
          %s475 = scalar_lea.vmem %s8, %s474
        $region52: #{tpu_custom_call.1} parent=19 // pred_fallthru
          _
        // Predicated region
        $region53: #{tpu_custom_call.1} parent=19 // pred_check
          %p476 = pneg %p286
        $region54: #{tpu_custom_call.1} parent=19 // pred_check_branch
          %478 = sbr.rel (%p476) target = $region56
        $region55: #{tpu_custom_call.1} parent=19 // pred_region
          %p479 = scmp.lt.s32.totalorder %s28, 1
          %s480 = scalar_select %p479, %s28, 1
          %s481 = smul.addr %s480, 4
          %s482 = smul.addr %s481, 4
          %s483 = scalar_lea.vmem %s9, %s482
        $region56: #{tpu_custom_call.1} parent=19 // pred_fallthru
          _
        // Predicated region
        $region57: #{tpu_custom_call.1} parent=19 // pred_check
          %p484 = pneg %p312
        $region58: #{tpu_custom_call.1} parent=19 // pred_check_branch
          %486 = sbr.rel (%p484) target = $region60
        $region59: #{tpu_custom_call.1} parent=19 // pred_region
          %p487 = scmp.lt.s32.totalorder %s28, 1
          %s488 = scalar_select %p487, %s28, 1
          %s489 = scalar_lea.vmem %s10, %s488
        $region60: #{tpu_custom_call.1} parent=19 // pred_fallthru
          _
        // Predicated region
        $region61: #{tpu_custom_call.1} parent=19 // pred_check
          %p490 = pneg %p338
        $region62: #{tpu_custom_call.1} parent=19 // pred_check_branch
          %492 = sbr.rel (%p490) target = $region64
        $region63: #{tpu_custom_call.1} parent=19 // pred_region
          %p493 = scmp.lt.s32.totalorder %s28, 1
          %s494 = scalar_select %p493, %s28, 1
          %s495 = smul.addr %s494, 16
          %s496 = smul.addr %s495, 4
          %s497 = scalar_lea.vmem %s11, %s496
        $region64: #{tpu_custom_call.1} parent=19 // pred_fallthru
          _
        // Predicated region
        $region65: #{tpu_custom_call.1} parent=19 // pred_check
          %p498 = pneg %p364
        $region66: #{tpu_custom_call.1} parent=19 // pred_check_branch
          %500 = sbr.rel (%p498) target = $region68
        $region67: #{tpu_custom_call.1} parent=19 // pred_region
          %p501 = scmp.lt.s32.totalorder %s28, 1
          %s502 = scalar_select %p501, %s28, 1
          %s503 = scalar_lea.vmem %s12, %s502
        $region68: #{tpu_custom_call.1} parent=19 // pred_fallthru
          _
      $region20: #{tpu_custom_call.1} parent=5 // pred_fallthru
        _
      %p504 = scmp.le.s32.totalorder 1, %s20
      %p505 = scmp.lt.s32.totalorder %s20, 3
      %p506 = pnand %p504, %p505
      %p507 = pneg %p506
      // Predicated region
      $region69: #{tpu_custom_call.1} parent=5 // pred_check
        _
      $region70: #{tpu_custom_call.1} parent=5 // pred_check_branch
        %509 = sbr.rel (%p506) target = $region72
      $region71: #{tpu_custom_call.1} parent=5 // pred_region
        %s510 = ssub.s32 %s20, 1
        %s511 = smul.u32 2, %s29
        %p512 = scmp.lt.s32.totalorder %s511, 1
        %s513 = scalar_select %p512, %s511, 1
        %s514 = smul.addr %s513, 8
        %s515 = scalar_lea.vmem %s0, %s514
        %p516 = pneg %p58
        %p517 = pneg %p55
        %p518 = scmp.lt.s32.totalorder %s30, 1
        %s519 = scalar_select %p518, %s30, 1
        %s520 = scalar_lea.vmem %s1, %s519
        %p521 = pneg %p84
        %p522 = pneg %p81
        %p523 = scmp.lt.s32.totalorder %s30, 1
        %s524 = scalar_select %p523, %s30, 1
        %s525 = scalar_lea.vmem %s2, %s524
        %p526 = pneg %p110
        %p527 = pneg %p107
        %p528 = scmp.lt.s32.totalorder %s30, 1
        %s529 = scalar_select %p528, %s30, 1
        %s530 = smul.addr %s529, 4
        %s531 = smul.addr %s530, 4
        %s532 = scalar_lea.vmem %s3, %s531
        %p533 = pneg %p136
        %p534 = pneg %p133
        %p535 = scmp.lt.s32.totalorder %s30, 1
        %s536 = scalar_select %p535, %s30, 1
        %s537 = scalar_lea.vmem %s4, %s536
        %p538 = pneg %p162
        %p539 = pneg %p159
        %p540 = scmp.lt.s32.totalorder %s30, 1
        %s541 = scalar_select %p540, %s30, 1
        %s542 = smul.addr %s541, 4
        %s543 = smul.addr %s542, 4
        %s544 = scalar_lea.vmem %s5, %s543
        %p545 = pneg %p188
        %p546 = pneg %p185
        %p547 = scmp.lt.s32.totalorder %s30, 1
        %s548 = scalar_select %p547, %s30, 1
        %s549 = scalar_lea.vmem %s6, %s548
        %p550 = pneg %p214
        %p551 = pneg %p211
        %p552 = scmp.lt.s32.totalorder %s30, 1
        %s553 = scalar_select %p552, %s30, 1
        %s554 = scalar_lea.vmem %s7, %s553
        %p555 = pneg %p240
        %p556 = pneg %p237
        %p557 = scmp.lt.s32.totalorder %s30, 1
        %s558 = scalar_select %p557, %s30, 1
        %s559 = scalar_lea.vmem %s8, %s558
        %p560 = pneg %p266
        %p561 = pneg %p263
        %p562 = scmp.lt.s32.totalorder %s30, 1
        %s563 = scalar_select %p562, %s30, 1
        %s564 = smul.addr %s563, 4
        %s565 = smul.addr %s564, 4
        %s566 = scalar_lea.vmem %s9, %s565
        %p567 = pneg %p292
        %p568 = pneg %p289
        %p569 = scmp.lt.s32.totalorder %s30, 1
        %s570 = scalar_select %p569, %s30, 1
        %s571 = scalar_lea.vmem %s10, %s570
        %p572 = pneg %p318
        %p573 = pneg %p315
        %p574 = scmp.lt.s32.totalorder %s30, 1
        %s575 = scalar_select %p574, %s30, 1
        %s576 = smul.addr %s575, 16
        %s577 = smul.addr %s576, 4
        %s578 = scalar_lea.vmem %s11, %s577
        %p579 = pneg %p344
        %p580 = pneg %p341
        %p581 = scmp.lt.s32.totalorder %s30, 1
        %s582 = scalar_select %p581, %s30, 1
        %s583 = scalar_lea.vmem %s12, %s582
        %p584 = pneg %p370
        %p585 = pneg %p367
        %p586 = pneg %p396
        %p587 = pneg %p393
        %s588 = smul.u32 2, %s29
        %p589 = scmp.lt.s32.totalorder %s588, 1
        %s590 = scalar_select %p589, %s588, 1
        %s591 = smul.addr %s590, 8
        %s592 = scalar_lea.vmem %s0, %s591
        %s593 = smul.u32 2, %s29
        %p594 = scmp.lt.s32.totalorder %s30, 1
        %s595 = scalar_select %p594, %s30, 1
        %s596 = scalar_lea.vmem %s1, %s595
        %p597 = scmp.lt.s32.totalorder %s30, 1
        %s598 = scalar_select %p597, %s30, 1
        %s599 = scalar_lea.vmem %s2, %s598
        %p600 = scmp.lt.s32.totalorder %s30, 1
        %s601 = scalar_select %p600, %s30, 1
        %s602 = smul.addr %s601, 4
        %s603 = smul.addr %s602, 4
        %s604 = scalar_lea.vmem %s3, %s603
        %p605 = scmp.lt.s32.totalorder %s30, 1
        %s606 = scalar_select %p605, %s30, 1
        %s607 = scalar_lea.vmem %s4, %s606
        %p608 = scmp.lt.s32.totalorder %s30, 1
        %s609 = scalar_select %p608, %s30, 1
        %s610 = smul.addr %s609, 4
        %s611 = smul.addr %s610, 4
        %s612 = scalar_lea.vmem %s5, %s611
        %p613 = scmp.lt.s32.totalorder %s30, 1
        %s614 = scalar_select %p613, %s30, 1
        %s615 = scalar_lea.vmem %s6, %s614
        %p616 = scmp.lt.s32.totalorder %s30, 1
        %s617 = scalar_select %p616, %s30, 1
        %s618 = scalar_lea.vmem %s7, %s617
        %p619 = scmp.lt.s32.totalorder %s30, 1
        %s620 = scalar_select %p619, %s30, 1
        %s621 = scalar_lea.vmem %s8, %s620
        %p622 = scmp.lt.s32.totalorder %s30, 1
        %s623 = scalar_select %p622, %s30, 1
        %s624 = smul.addr %s623, 4
        %s625 = smul.addr %s624, 4
        %s626 = scalar_lea.vmem %s9, %s625
        %p627 = scmp.lt.s32.totalorder %s30, 1
        %s628 = scalar_select %p627, %s30, 1
        %s629 = scalar_lea.vmem %s10, %s628
        %p630 = scmp.lt.s32.totalorder %s30, 1
        %s631 = scalar_select %p630, %s30, 1
        %s632 = smul.addr %s631, 16
        %s633 = smul.addr %s632, 4
        %s634 = scalar_lea.vmem %s11, %s633
        %p635 = scmp.lt.s32.totalorder %s30, 1
        %s636 = scalar_select %p635, %s30, 1
        %s637 = scalar_lea.vmem %s12, %s636
        %s638 = smul.u32 2, %s29
        %p641 = scmp.eq.s32.totalorder %s30, 0
        // Predicated region
        $region73: #{tpu_custom_call.1} parent=71 // pred_check
          %p642 = pneg %p641
        $region74: #{tpu_custom_call.1} parent=71 // pred_check_branch
          %644 = sbr.rel (%p642) target = $region76
        $region75: #{tpu_custom_call.1} parent=71 // pred_region
          %v645 = vld [vmem:[%s592] sm:$0xff]
          %v646 = vld [vmem:[%s592 + $0x8] sm:$0xff]
          %vm647 = vcmask 261120
          %648 = vst.msk [vmem:[#allocation3] sm:$0xff] %vm647, %v645
          %649 = vst.msk [vmem:[#allocation3 + $0x8] sm:$0xff] %vm647, %v646
        $region76: #{tpu_custom_call.1} parent=71 // pred_fallthru
          _
        %v650 = vld [vmem:[#allocation3] sm:$0xff]
        %v651 = vld [vmem:[#allocation3 + $0x8] sm:$0xff]
        %v652 = vld [vmem:[%s596] sm:$0x1]
        %v653 = vld [vmem:[%s599] sm:$0x1]
        %vm654 = vcmask 261120
        %v655 = vsel %vm654, %v650, 0.0
        %656 = vadd.xlane.f32.xlu0 %v655
        %v657 = vpop.xlane.xlu0 %656
        %v658 = vsel %vm654, %v651, 0.0
        %659 = vadd.xlane.f32.xlu0 %v658
        %v660 = vpop.xlane.xlu0 %659
        %v661 = vrcp.pop 32.0
        %v662 = vmul.f32 32.0, %v661
        %v663 = vsub.f32 1.0, %v662
        %v664 = vmul.f32 %v661, %v663
        %v665 = vadd.f32 %v661, %v664
        %vm666 = vweird.f32 %v661
        %v667 = vsel %vm666, %v661, %v665
        %v668 = vmul.f32 %v657, %v667
        %v669 = vmul.f32 %v660, %v667
        %v670 = vmul.f32 %v650, %v650
        %v671 = vmul.f32 %v651, %v651
        %v672 = vsel %vm654, %v670, 0.0
        %673 = vadd.xlane.f32.xlu0 %v672
        %v674 = vpop.xlane.xlu0 %673
        %v675 = vsel %vm654, %v671, 0.0
        %676 = vadd.xlane.f32.xlu0 %v675
        %v677 = vpop.xlane.xlu0 %676
        %v678 = vmul.f32 %v674, %v667
        %v679 = vmul.f32 %v677, %v667
        %v680 = vmul.f32 %v668, %v668
        %v681 = vmul.f32 %v669, %v669
        %v682 = vsub.f32 %v678, %v680
        %v683 = vsub.f32 %v679, %v681
        %v684 = vsub.f32 %v650, %v668
        %v685 = vsub.f32 %v651, %v669
        %v686 = vadd.f32 %v682, 1e-05
        %v687 = vadd.f32 %v683, 1e-05
        %v688 = vrsqrt.pop %v686
        %v689 = vmul.f32 %v688, %v686
        %v690 = vmul.f32 %v689, %v688
        %v691 = vmul.f32 0.5, %v690
        %v692 = vsub.f32 1.5, %v691
        %v693 = vmul.f32 %v688, %v692
        %vm694 = vweird.f32 %v686
        %vm695 = vweird.f32 %v688
        %vm696 = vmor %vm694, %vm695
        %v697 = vsel %vm696, %v688, %v693
        %v698 = vrsqrt.pop %v687
        %v699 = vmul.f32 %v698, %v687
        %v700 = vmul.f32 %v699, %v698
        %v701 = vmul.f32 0.5, %v700
        %v702 = vsub.f32 1.5, %v701
        %v703 = vmul.f32 %v698, %v702
        %vm704 = vweird.f32 %v687
        %vm705 = vweird.f32 %v698
        %vm706 = vmor %vm704, %vm705
        %v707 = vsel %vm706, %v698, %v703
        %v708 = vmul.f32 %v684, %v697
        %v709 = vmul.f32 %v685, %v707
        %v711 = vperm.slane %v652, 0
        %v713 = vmul.f32 %v708, %v711
        %v714 = vmul.f32 %v709, %v711
        %v716 = vperm.slane %v653, 0
        %v718 = vadd.f32 %v713, %v716
        %v719 = vadd.f32 %v714, %v716
        %v720 = vpack.c.bf16 %v719, %v718
        %v721 = vld [vmem:[%s604] sm:$0xf]
        %v722 = vld [vmem:[%s604 + $0x4] sm:$0xf]
        %v723 = vld [vmem:[%s604 + $0x8] sm:$0xf]
        %v724 = vld [vmem:[%s604 + $0xc] sm:$0xf]
        %v725 = vld [vmem:[%s607] sm:$0x1]
        %v727 = vperm.slane %v725, 0
        %v733 = vunpack.c.l.b16 %v721
        %v734 = vunpack.c.l.b16 %v722
        %v735 = vunpack.c.l.b16 %v723
        %v736 = vunpack.c.l.b16 %v724
        %v737 = vpack.c.b16 %v734, %v733
        %v738 = vpack.c.b16 %v736, %v735
        %v742 = vsel %vm654, %v720, 0
        %744 = vmatpush.bf16.msra.mxu0 0
        %745 = vmatpush.bf16.msra.mxu0 0
        %746 = vmatpush.bf16.msra.mxu0 0
        %747 = vmatpush.bf16.msra.mxu0 0
        %748 = vmatpush.bf16.msra.mxu0 0
        %749 = vmatpush.bf16.msra.mxu0 0
        %750 = vmatpush.bf16.msra.mxu0 %v738
        %751 = vmatpush.bf16.msra.mxu0 %v737
        %752 = vmatmul.bf16.gmra.mxu0 %v742
        %v753 = vpop.f32.mrf.mxu0
        %v754 = vadd.f32 %v727, %v753
        %v755 = vpop.f32.mrf.mxu0
        %v756 = vadd.f32 %v727, %v755
        %757 = vdwg.mxu0
        %v758 = vpack.c.bf16 %v754, %v754
        %v759 = vpack.c.bf16 %v756, %v756
        %v761 = vunpack.c.l.b16 %v758
        %v762 = vpack.c.b16 %v761, %v761
        %763 = vrot.lane.b32.xlu0 %v762, 96
        %v764 = vpop.permute.xlu0 %763
        %vm765 = vcmask 64512
        %v767 = vsel %vm765, %v758, 0
        %v770 = vsel %vm765, %v764, 0
        %772 = vmatpush.bf16.xpose.msra.mxu0 0
        %773 = vmatpush.bf16.xpose.msra.mxu0 0
        %774 = vmatpush.bf16.xpose.msra.mxu0 0
        %775 = vmatpush.bf16.xpose.msra.mxu0 0
        %776 = vmatpush.bf16.xpose.msra.mxu0 0
        %777 = vmatpush.bf16.xpose.msra.mxu0 0
        %778 = vmatpush.bf16.xpose.msra.mxu0 0
        %779 = vmatpush.bf16.xpose.msra.mxu0 %v770
        %780 = vmatmul.bf16.gmra.mxu0 %v767
        %v781 = vpop.f32.mrf.mxu0
        %v782 = vadd.f32 0.0, %v781
        %v783 = vpop.f32.mrf.mxu0
        %784 = vdwg.mxu0
        %v786 = vunpack.c.l.b16 %v759
        %v787 = vpack.c.b16 %v786, %v786
        %788 = vrot.lane.b32.xlu0 %v787, 96
        %v789 = vpop.permute.xlu0 %788
        %v791 = vsel %vm765, %v759, 0
        %v794 = vsel %vm765, %v789, 0
        %796 = vmatpush.bf16.xpose.msra.mxu0 0
        %797 = vmatpush.bf16.xpose.msra.mxu0 0
        %798 = vmatpush.bf16.xpose.msra.mxu0 0
        %799 = vmatpush.bf16.xpose.msra.mxu0 0
        %800 = vmatpush.bf16.xpose.msra.mxu0 0
        %801 = vmatpush.bf16.xpose.msra.mxu0 0
        %802 = vmatpush.bf16.xpose.msra.mxu0 0
        %803 = vmatpush.bf16.xpose.msra.mxu0 %v794
        %804 = vmatmul.bf16.gmra.mxu0 %v791
        %v805 = vpop.f32.mrf.mxu0
        %v806 = vadd.f32 0.0, %v805
        %v807 = vpop.f32.mrf.mxu0
        %808 = vdwg.mxu0
        %v809 = vsel %vm765, %v782, -inf
        %810 = vmax.xlane.f32.xlu0 %v809
        %v811 = vpop.xlane.xlu0 %810
        %v812 = vsel %vm765, %v806, -inf
        %813 = vmax.xlane.f32.xlu0 %v812
        %v814 = vpop.xlane.xlu0 %813
        %v815 = vsub.f32 %v782, %v811
        %v816 = vsub.f32 %v806, %v814
        %v817 = vmul.f32 %v815, 1.442695
        %v818 = vpow.pop %v817
        %v819 = vmul.f32 %v816, 1.442695
        %v820 = vpow.pop %v819
        %v821 = vsel %vm765, %v818, 0.0
        %822 = vadd.xlane.f32.xlu0 %v821
        %v823 = vpop.xlane.xlu0 %822
        %v824 = vsel %vm765, %v820, 0.0
        %825 = vadd.xlane.f32.xlu0 %v824
        %v826 = vpop.xlane.xlu0 %825
        %v827 = vpack.c.bf16 %v818, %v818
        %v828 = vpack.c.bf16 %v820, %v820
        %829 = vrot.lane.b32.xlu0 %v762, 64
        %v830 = vpop.permute.xlu0 %829
        %v832 = vsel %vm765, %v827, 0
        %vm834 = vcmask 1043456
        %v836 = vsel %vm834, %v830, 0
        %838 = vmatpush.bf16.msra.mxu0 0
        %839 = vmatpush.bf16.msra.mxu0 0
        %840 = vmatpush.bf16.msra.mxu0 0
        %841 = vmatpush.bf16.msra.mxu0 0
        %842 = vmatpush.bf16.msra.mxu0 0
        %843 = vmatpush.bf16.msra.mxu0 0
        %844 = vmatpush.bf16.msra.mxu0 0
        %845 = vmatpush.bf16.msra.mxu0 %v836
        %846 = vmatmul.bf16.gmra.mxu0 %v832
        %v847 = vpop.f32.mrf.mxu0
        %v848 = vadd.f32 0.0, %v847
        %v849 = vpop.f32.mrf.mxu0
        %850 = vdwg.mxu0
        %851 = vrot.lane.b32.xlu0 %v787, 64
        %v852 = vpop.permute.xlu0 %851
        %v854 = vsel %vm765, %v828, 0
        %v857 = vsel %vm834, %v852, 0
        %859 = vmatpush.bf16.msra.mxu0 0
        %860 = vmatpush.bf16.msra.mxu0 0
        %861 = vmatpush.bf16.msra.mxu0 0
        %862 = vmatpush.bf16.msra.mxu0 0
        %863 = vmatpush.bf16.msra.mxu0 0
        %864 = vmatpush.bf16.msra.mxu0 0
        %865 = vmatpush.bf16.msra.mxu0 0
        %866 = vmatpush.bf16.msra.mxu0 %v857
        %867 = vmatmul.bf16.gmra.mxu0 %v854
        %v868 = vpop.f32.mrf.mxu0
        %v869 = vadd.f32 0.0, %v868
        %v870 = vpop.f32.mrf.mxu0
        %871 = vdwg.mxu0
        %v872 = vrcp.pop %v823
        %v873 = vrcp.pop %v826
        %v874 = vmul.f32 %v848, %v872
        %v875 = vmul.f32 %v869, %v873
        %v876 = vpack.c.bf16 %v874, %v874
        %v877 = vpack.c.bf16 %v875, %v875
        %vm878 = vcmask 60416
        %879 = vst.msk [vmem:[#allocation2] sm:$0xf] %vm878, %v876
        %880 = vst.msk [vmem:[#allocation2 + $0x4] sm:$0xf] %vm878, %v877
        %881 = vrot.lane.b32.xlu0 %v762, 120
        %v882 = vpop.permute.xlu0 %881
        %883 = vrot.lane.b32.xlu0 %v762, 88
        %v884 = vpop.permute.xlu0 %883
        %v886 = vsel %vm765, %v882, 0
        %v889 = vsel %vm765, %v884, 0
        %891 = vmatpush.bf16.xpose.msra.mxu0 0
        %892 = vmatpush.bf16.xpose.msra.mxu0 0
        %893 = vmatpush.bf16.xpose.msra.mxu0 0
        %894 = vmatpush.bf16.xpose.msra.mxu0 0
        %895 = vmatpush.bf16.xpose.msra.mxu0 0
        %896 = vmatpush.bf16.xpose.msra.mxu0 0
        %897 = vmatpush.bf16.xpose.msra.mxu0 0
        %898 = vmatpush.bf16.xpose.msra.mxu0 %v889
        %899 = vmatmul.bf16.gmra.mxu0 %v886
        %v900 = vpop.f32.mrf.mxu0
        %v901 = vadd.f32 0.0, %v900
        %v902 = vpop.f32.mrf.mxu0
        %903 = vdwg.mxu0
        %904 = vrot.lane.b32.xlu0 %v787, 120
        %v905 = vpop.permute.xlu0 %904
        %906 = vrot.lane.b32.xlu0 %v787, 88
        %v907 = vpop.permute.xlu0 %906
        %v909 = vsel %vm765, %v905, 0
        %v912 = vsel %vm765, %v907, 0
        %914 = vmatpush.bf16.xpose.msra.mxu0 0
        %915 = vmatpush.bf16.xpose.msra.mxu0 0
        %916 = vmatpush.bf16.xpose.msra.mxu0 0
        %917 = vmatpush.bf16.xpose.msra.mxu0 0
        %918 = vmatpush.bf16.xpose.msra.mxu0 0
        %919 = vmatpush.bf16.xpose.msra.mxu0 0
        %920 = vmatpush.bf16.xpose.msra.mxu0 0
        %921 = vmatpush.bf16.xpose.msra.mxu0 %v912
        %922 = vmatmul.bf16.gmra.mxu0 %v909
        %v923 = vpop.f32.mrf.mxu0
        %v924 = vadd.f32 0.0, %v923
        %v925 = vpop.f32.mrf.mxu0
        %926 = vdwg.mxu0
        %v927 = vsel %vm765, %v901, -inf
        %928 = vmax.xlane.f32.xlu0 %v927
        %v929 = vpop.xlane.xlu0 %928
        %v930 = vsel %vm765, %v924, -inf
        %931 = vmax.xlane.f32.xlu0 %v930
        %v932 = vpop.xlane.xlu0 %931
        %v933 = vsub.f32 %v901, %v929
        %v934 = vsub.f32 %v924, %v932
        %v935 = vmul.f32 %v933, 1.442695
        %v936 = vpow.pop %v935
        %v937 = vmul.f32 %v934, 1.442695
        %v938 = vpow.pop %v937
        %v939 = vsel %vm765, %v936, 0.0
        %940 = vadd.xlane.f32.xlu0 %v939
        %v941 = vpop.xlane.xlu0 %940
        %v942 = vsel %vm765, %v938, 0.0
        %943 = vadd.xlane.f32.xlu0 %v942
        %v944 = vpop.xlane.xlu0 %943
        %v945 = vpack.c.bf16 %v936, %v936
        %v946 = vpack.c.bf16 %v938, %v938
        %947 = vrot.lane.b32.xlu0 %v762, 56
        %v948 = vpop.permute.xlu0 %947
        %v950 = vsel %vm765, %v945, 0
        %v953 = vsel %vm834, %v948, 0
        %955 = vmatpush.bf16.msra.mxu0 0
        %956 = vmatpush.bf16.msra.mxu0 0
        %957 = vmatpush.bf16.msra.mxu0 0
        %958 = vmatpush.bf16.msra.mxu0 0
        %959 = vmatpush.bf16.msra.mxu0 0
        %960 = vmatpush.bf16.msra.mxu0 0
        %961 = vmatpush.bf16.msra.mxu0 0
        %962 = vmatpush.bf16.msra.mxu0 %v953
        %963 = vmatmul.bf16.gmra.mxu0 %v950
        %v964 = vpop.f32.mrf.mxu0
        %v965 = vadd.f32 0.0, %v964
        %v966 = vpop.f32.mrf.mxu0
        %967 = vdwg.mxu0
        %968 = vrot.lane.b32.xlu0 %v787, 56
        %v969 = vpop.permute.xlu0 %968
        %v971 = vsel %vm765, %v946, 0
        %v974 = vsel %vm834, %v969, 0
        %976 = vmatpush.bf16.msra.mxu0 0
        %977 = vmatpush.bf16.msra.mxu0 0
        %978 = vmatpush.bf16.msra.mxu0 0
        %979 = vmatpush.bf16.msra.mxu0 0
        %980 = vmatpush.bf16.msra.mxu0 0
        %981 = vmatpush.bf16.msra.mxu0 0
        %982 = vmatpush.bf16.msra.mxu0 0
        %983 = vmatpush.bf16.msra.mxu0 %v974
        %984 = vmatmul.bf16.gmra.mxu0 %v971
        %v985 = vpop.f32.mrf.mxu0
        %v986 = vadd.f32 0.0, %v985
        %v987 = vpop.f32.mrf.mxu0
        %988 = vdwg.mxu0
        %v989 = vrcp.pop %v941
        %v990 = vrcp.pop %v944
        %v991 = vmul.f32 %v965, %v989
        %v992 = vmul.f32 %v986, %v990
        %v993 = vpack.c.bf16 %v991, %v991
        %v994 = vpack.c.bf16 %v992, %v992
        %997 = vrot.lane.b32.xlu0 %v993, 8
        %v998 = vpop.permute.xlu0 %997
        %999 = vrot.lane.b32.xlu0 %v994, 8
        %v1000 = vpop.permute.xlu0 %999
        %vm1003 = vcmask 126016
        %1004 = vst.msk [vmem:[#allocation2] sm:$0xf] %vm1003, %v998
        %1005 = vst.msk [vmem:[#allocation2 + $0x4] sm:$0xf] %vm1003, %v1000
        %1006 = vrot.lane.b32.xlu0 %v762, 112
        %v1007 = vpop.permute.xlu0 %1006
        %1008 = vrot.lane.b32.xlu0 %v762, 80
        %v1009 = vpop.permute.xlu0 %1008
        %v1011 = vsel %vm765, %v1007, 0
        %v1014 = vsel %vm765, %v1009, 0
        %1016 = vmatpush.bf16.xpose.msra.mxu0 0
        %1017 = vmatpush.bf16.xpose.msra.mxu0 0
        %1018 = vmatpush.bf16.xpose.msra.mxu0 0
        %1019 = vmatpush.bf16.xpose.msra.mxu0 0
        %1020 = vmatpush.bf16.xpose.msra.mxu0 0
        %1021 = vmatpush.bf16.xpose.msra.mxu0 0
        %1022 = vmatpush.bf16.xpose.msra.mxu0 0
        %1023 = vmatpush.bf16.xpose.msra.mxu0 %v1014
        %1024 = vmatmul.bf16.gmra.mxu0 %v1011
        %v1025 = vpop.f32.mrf.mxu0
        %v1026 = vadd.f32 0.0, %v1025
        %v1027 = vpop.f32.mrf.mxu0
        %1028 = vdwg.mxu0
        %1029 = vrot.lane.b32.xlu0 %v787, 112
        %v1030 = vpop.permute.xlu0 %1029
        %1031 = vrot.lane.b32.xlu0 %v787, 80
        %v1032 = vpop.permute.xlu0 %1031
        %v1034 = vsel %vm765, %v1030, 0
        %v1037 = vsel %vm765, %v1032, 0
        %1039 = vmatpush.bf16.xpose.msra.mxu0 0
        %1040 = vmatpush.bf16.xpose.msra.mxu0 0
        %1041 = vmatpush.bf16.xpose.msra.mxu0 0
        %1042 = vmatpush.bf16.xpose.msra.mxu0 0
        %1043 = vmatpush.bf16.xpose.msra.mxu0 0
        %1044 = vmatpush.bf16.xpose.msra.mxu0 0
        %1045 = vmatpush.bf16.xpose.msra.mxu0 0
        %1046 = vmatpush.bf16.xpose.msra.mxu0 %v1037
        %1047 = vmatmul.bf16.gmra.mxu0 %v1034
        %v1048 = vpop.f32.mrf.mxu0
        %v1049 = vadd.f32 0.0, %v1048
        %v1050 = vpop.f32.mrf.mxu0
        %1051 = vdwg.mxu0
        %v1052 = vsel %vm765, %v1026, -inf
        %1053 = vmax.xlane.f32.xlu0 %v1052
        %v1054 = vpop.xlane.xlu0 %1053
        %v1055 = vsel %vm765, %v1049, -inf
        %1056 = vmax.xlane.f32.xlu0 %v1055
        %v1057 = vpop.xlane.xlu0 %1056
        %v1058 = vsub.f32 %v1026, %v1054
        %v1059 = vsub.f32 %v1049, %v1057
        %v1060 = vmul.f32 %v1058, 1.442695
        %v1061 = vpow.pop %v1060
        %v1062 = vmul.f32 %v1059, 1.442695
        %v1063 = vpow.pop %v1062
        %v1064 = vsel %vm765, %v1061, 0.0
        %1065 = vadd.xlane.f32.xlu0 %v1064
        %v1066 = vpop.xlane.xlu0 %1065
        %v1067 = vsel %vm765, %v1063, 0.0
        %1068 = vadd.xlane.f32.xlu0 %v1067
        %v1069 = vpop.xlane.xlu0 %1068
        %v1070 = vpack.c.bf16 %v1061, %v1061
        %v1071 = vpack.c.bf16 %v1063, %v1063
        %1072 = vrot.lane.b32.xlu0 %v762, 48
        %v1073 = vpop.permute.xlu0 %1072
        %v1075 = vsel %vm765, %v1070, 0
        %v1078 = vsel %vm834, %v1073, 0
        %1080 = vmatpush.bf16.msra.mxu0 0
        %1081 = vmatpush.bf16.msra.mxu0 0
        %1082 = vmatpush.bf16.msra.mxu0 0
        %1083 = vmatpush.bf16.msra.mxu0 0
        %1084 = vmatpush.bf16.msra.mxu0 0
        %1085 = vmatpush.bf16.msra.mxu0 0
        %1086 = vmatpush.bf16.msra.mxu0 0
        %1087 = vmatpush.bf16.msra.mxu0 %v1078
        %1088 = vmatmul.bf16.gmra.mxu0 %v1075
        %v1089 = vpop.f32.mrf.mxu0
        %v1090 = vadd.f32 0.0, %v1089
        %v1091 = vpop.f32.mrf.mxu0
        %1092 = vdwg.mxu0
        %1093 = vrot.lane.b32.xlu0 %v787, 48
        %v1094 = vpop.permute.xlu0 %1093
        %v1096 = vsel %vm765, %v1071, 0
        %v1099 = vsel %vm834, %v1094, 0
        %1101 = vmatpush.bf16.msra.mxu0 0
        %1102 = vmatpush.bf16.msra.mxu0 0
        %1103 = vmatpush.bf16.msra.mxu0 0
        %1104 = vmatpush.bf16.msra.mxu0 0
        %1105 = vmatpush.bf16.msra.mxu0 0
        %1106 = vmatpush.bf16.msra.mxu0 0
        %1107 = vmatpush.bf16.msra.mxu0 0
        %1108 = vmatpush.bf16.msra.mxu0 %v1099
        %1109 = vmatmul.bf16.gmra.mxu0 %v1096
        %v1110 = vpop.f32.mrf.mxu0
        %v1111 = vadd.f32 0.0, %v1110
        %v1112 = vpop.f32.mrf.mxu0
        %1113 = vdwg.mxu0
        %v1114 = vrcp.pop %v1066
        %v1115 = vrcp.pop %v1069
        %v1116 = vmul.f32 %v1090, %v1114
        %v1117 = vmul.f32 %v1111, %v1115
        %v1118 = vpack.c.bf16 %v1116, %v1116
        %v1119 = vpack.c.bf16 %v1117, %v1117
        %1122 = vrot.lane.b32.xlu0 %v1118, 16
        %v1123 = vpop.permute.xlu0 %1122
        %1124 = vrot.lane.b32.xlu0 %v1119, 16
        %v1125 = vpop.permute.xlu0 %1124
        %vm1128 = vcmask 191616
        %1129 = vst.msk [vmem:[#allocation2] sm:$0xf] %vm1128, %v1123
        %1130 = vst.msk [vmem:[#allocation2 + $0x4] sm:$0xf] %vm1128, %v1125
        %1131 = vrot.lane.b32.xlu0 %v762, 104
        %v1132 = vpop.permute.xlu0 %1131
        %1133 = vrot.lane.b32.xlu0 %v762, 72
        %v1134 = vpop.permute.xlu0 %1133
        %v1136 = vsel %vm765, %v1132, 0
        %v1139 = vsel %vm765, %v1134, 0
        %1141 = vmatpush.bf16.xpose.msra.mxu0 0
        %1142 = vmatpush.bf16.xpose.msra.mxu0 0
        %1143 = vmatpush.bf16.xpose.msra.mxu0 0
        %1144 = vmatpush.bf16.xpose.msra.mxu0 0
        %1145 = vmatpush.bf16.xpose.msra.mxu0 0
        %1146 = vmatpush.bf16.xpose.msra.mxu0 0
        %1147 = vmatpush.bf16.xpose.msra.mxu0 0
        %1148 = vmatpush.bf16.xpose.msra.mxu0 %v1139
        %1149 = vmatmul.bf16.gmra.mxu0 %v1136
        %v1150 = vpop.f32.mrf.mxu0
        %v1151 = vadd.f32 0.0, %v1150
        %v1152 = vpop.f32.mrf.mxu0
        %1153 = vdwg.mxu0
        %1154 = vrot.lane.b32.xlu0 %v787, 104
        %v1155 = vpop.permute.xlu0 %1154
        %1156 = vrot.lane.b32.xlu0 %v787, 72
        %v1157 = vpop.permute.xlu0 %1156
        %v1159 = vsel %vm765, %v1155, 0
        %v1162 = vsel %vm765, %v1157, 0
        %1164 = vmatpush.bf16.xpose.msra.mxu0 0
        %1165 = vmatpush.bf16.xpose.msra.mxu0 0
        %1166 = vmatpush.bf16.xpose.msra.mxu0 0
        %1167 = vmatpush.bf16.xpose.msra.mxu0 0
        %1168 = vmatpush.bf16.xpose.msra.mxu0 0
        %1169 = vmatpush.bf16.xpose.msra.mxu0 0
        %1170 = vmatpush.bf16.xpose.msra.mxu0 0
        %1171 = vmatpush.bf16.xpose.msra.mxu0 %v1162
        %1172 = vmatmul.bf16.gmra.mxu0 %v1159
        %v1173 = vpop.f32.mrf.mxu0
        %v1174 = vadd.f32 0.0, %v1173
        %v1175 = vpop.f32.mrf.mxu0
        %1176 = vdwg.mxu0
        %v1177 = vsel %vm765, %v1151, -inf
        %1178 = vmax.xlane.f32.xlu0 %v1177
        %v1179 = vpop.xlane.xlu0 %1178
        %v1180 = vsel %vm765, %v1174, -inf
        %1181 = vmax.xlane.f32.xlu0 %v1180
        %v1182 = vpop.xlane.xlu0 %1181
        %v1183 = vsub.f32 %v1151, %v1179
        %v1184 = vsub.f32 %v1174, %v1182
        %v1185 = vmul.f32 %v1183, 1.442695
        %v1186 = vpow.pop %v1185
        %v1187 = vmul.f32 %v1184, 1.442695
        %v1188 = vpow.pop %v1187
        %v1189 = vsel %vm765, %v1186, 0.0
        %1190 = vadd.xlane.f32.xlu0 %v1189
        %v1191 = vpop.xlane.xlu0 %1190
        %v1192 = vsel %vm765, %v1188, 0.0
        %1193 = vadd.xlane.f32.xlu0 %v1192
        %v1194 = vpop.xlane.xlu0 %1193
        %v1195 = vpack.c.bf16 %v1186, %v1186
        %v1196 = vpack.c.bf16 %v1188, %v1188
        %1197 = vrot.lane.b32.xlu0 %v762, 40
        %v1198 = vpop.permute.xlu0 %1197
        %v1200 = vsel %vm765, %v1195, 0
        %v1203 = vsel %vm834, %v1198, 0
        %1205 = vmatpush.bf16.msra.mxu0 0
        %1206 = vmatpush.bf16.msra.mxu0 0
        %1207 = vmatpush.bf16.msra.mxu0 0
        %1208 = vmatpush.bf16.msra.mxu0 0
        %1209 = vmatpush.bf16.msra.mxu0 0
        %1210 = vmatpush.bf16.msra.mxu0 0
        %1211 = vmatpush.bf16.msra.mxu0 0
        %1212 = vmatpush.bf16.msra.mxu0 %v1203
        %1213 = vmatmul.bf16.gmra.mxu0 %v1200
        %v1214 = vpop.f32.mrf.mxu0
        %v1215 = vadd.f32 0.0, %v1214
        %v1216 = vpop.f32.mrf.mxu0
        %1217 = vdwg.mxu0
        %1218 = vrot.lane.b32.xlu0 %v787, 40
        %v1219 = vpop.permute.xlu0 %1218
        %v1221 = vsel %vm765, %v1196, 0
        %v1224 = vsel %vm834, %v1219, 0
        %1226 = vmatpush.bf16.msra.mxu0 0
        %1227 = vmatpush.bf16.msra.mxu0 0
        %1228 = vmatpush.bf16.msra.mxu0 0
        %1229 = vmatpush.bf16.msra.mxu0 0
        %1230 = vmatpush.bf16.msra.mxu0 0
        %1231 = vmatpush.bf16.msra.mxu0 0
        %1232 = vmatpush.bf16.msra.mxu0 0
        %1233 = vmatpush.bf16.msra.mxu0 %v1224
        %1234 = vmatmul.bf16.gmra.mxu0 %v1221
        %v1235 = vpop.f32.mrf.mxu0
        %v1236 = vadd.f32 0.0, %v1235
        %v1237 = vpop.f32.mrf.mxu0
        %1238 = vdwg.mxu0
        %v1239 = vrcp.pop %v1191
        %v1240 = vrcp.pop %v1194
        %v1241 = vmul.f32 %v1215, %v1239
        %v1242 = vmul.f32 %v1236, %v1240
        %v1243 = vpack.c.bf16 %v1241, %v1241
        %v1244 = vpack.c.bf16 %v1242, %v1242
        %1247 = vrot.lane.b32.xlu0 %v1243, 24
        %v1248 = vpop.permute.xlu0 %1247
        %1249 = vrot.lane.b32.xlu0 %v1244, 24
        %v1250 = vpop.permute.xlu0 %1249
        %vm1253 = vcmask 257216
        %1254 = vst.msk [vmem:[#allocation2] sm:$0xf] %vm1253, %v1248
        %1255 = vst.msk [vmem:[#allocation2 + $0x4] sm:$0xf] %vm1253, %v1250
        %v1256 = vld [vmem:[#allocation2] sm:$0xf]
        %v1257 = vld [vmem:[#allocation2 + $0x4] sm:$0xf]
        %v1258 = vld [vmem:[%s612] sm:$0xf]
        %v1259 = vld [vmem:[%s612 + $0x4] sm:$0xf]
        %v1260 = vld [vmem:[%s612 + $0x8] sm:$0xf]
        %v1261 = vld [vmem:[%s612 + $0xc] sm:$0xf]
        %v1264 = vunpack.c.l.b16 %v1256
        %v1265 = vunpack.c.l.b16 %v1257
        %v1266 = vpack.c.b16 %v1265, %v1264
        %v1271 = vunpack.c.l.b16 %v1258
        %v1272 = vunpack.c.l.b16 %v1259
        %v1273 = vunpack.c.l.b16 %v1260
        %v1274 = vunpack.c.l.b16 %v1261
        %v1275 = vpack.c.b16 %v1272, %v1271
        %v1276 = vpack.c.b16 %v1274, %v1273
        %v1280 = vsel %vm654, %v1266, 0
        %1282 = vmatpush.bf16.msra.mxu0 0
        %1283 = vmatpush.bf16.msra.mxu0 0
        %1284 = vmatpush.bf16.msra.mxu0 0
        %1285 = vmatpush.bf16.msra.mxu0 0
        %1286 = vmatpush.bf16.msra.mxu0 0
        %1287 = vmatpush.bf16.msra.mxu0 0
        %1288 = vmatpush.bf16.msra.mxu0 %v1276
        %1289 = vmatpush.bf16.msra.mxu0 %v1275
        %1290 = vmatmul.bf16.gmra.mxu0 %v1280
        %v1291 = vpop.f32.mrf.mxu0
        %v1292 = vadd.f32 0.0, %v1291
        %v1293 = vpop.f32.mrf.mxu0
        %v1294 = vadd.f32 0.0, %v1293
        %1295 = vdwg.mxu0
        %v1296 = vadd.f32 %v650, %v1292
        %v1297 = vadd.f32 %v651, %v1294
        %v1298 = vld [vmem:[%s615] sm:$0x1]
        %v1300 = vperm.slane %v1298, 0
        %v1302 = vadd.f32 %v1296, %v1300
        %v1303 = vadd.f32 %v1297, %v1300
        %v1304 = vld [vmem:[%s618] sm:$0x1]
        %v1305 = vld [vmem:[%s621] sm:$0x1]
        %v1306 = vsel %vm654, %v1302, 0.0
        %1307 = vadd.xlane.f32.xlu0 %v1306
        %v1308 = vpop.xlane.xlu0 %1307
        %v1309 = vsel %vm654, %v1303, 0.0
        %1310 = vadd.xlane.f32.xlu0 %v1309
        %v1311 = vpop.xlane.xlu0 %1310
        %v1312 = vmul.f32 %v1308, %v667
        %v1313 = vmul.f32 %v1311, %v667
        %v1314 = vmul.f32 %v1302, %v1302
        %v1315 = vmul.f32 %v1303, %v1303
        %v1316 = vsel %vm654, %v1314, 0.0
        %1317 = vadd.xlane.f32.xlu0 %v1316
        %v1318 = vpop.xlane.xlu0 %1317
        %v1319 = vsel %vm654, %v1315, 0.0
        %1320 = vadd.xlane.f32.xlu0 %v1319
        %v1321 = vpop.xlane.xlu0 %1320
        %v1322 = vmul.f32 %v1318, %v667
        %v1323 = vmul.f32 %v1321, %v667
        %v1324 = vmul.f32 %v1312, %v1312
        %v1325 = vmul.f32 %v1313, %v1313
        %v1326 = vsub.f32 %v1322, %v1324
        %v1327 = vsub.f32 %v1323, %v1325
        %v1328 = vsub.f32 %v1302, %v1312
        %v1329 = vsub.f32 %v1303, %v1313
        %v1330 = vadd.f32 %v1326, 1e-05
        %v1331 = vadd.f32 %v1327, 1e-05
        %v1332 = vrsqrt.pop %v1330
        %v1333 = vmul.f32 %v1332, %v1330
        %v1334 = vmul.f32 %v1333, %v1332
        %v1335 = vmul.f32 0.5, %v1334
        %v1336 = vsub.f32 1.5, %v1335
        %v1337 = vmul.f32 %v1332, %v1336
        %vm1338 = vweird.f32 %v1330
        %vm1339 = vweird.f32 %v1332
        %vm1340 = vmor %vm1338, %vm1339
        %v1341 = vsel %vm1340, %v1332, %v1337
        %v1342 = vrsqrt.pop %v1331
        %v1343 = vmul.f32 %v1342, %v1331
        %v1344 = vmul.f32 %v1343, %v1342
        %v1345 = vmul.f32 0.5, %v1344
        %v1346 = vsub.f32 1.5, %v1345
        %v1347 = vmul.f32 %v1342, %v1346
        %vm1348 = vweird.f32 %v1331
        %vm1349 = vweird.f32 %v1342
        %vm1350 = vmor %vm1348, %vm1349
        %v1351 = vsel %vm1350, %v1342, %v1347
        %v1352 = vmul.f32 %v1328, %v1341
        %v1353 = vmul.f32 %v1329, %v1351
        %v1355 = vperm.slane %v1304, 0
        %v1357 = vmul.f32 %v1352, %v1355
        %v1358 = vmul.f32 %v1353, %v1355
        %v1360 = vperm.slane %v1305, 0
        %v1362 = vadd.f32 %v1357, %v1360
        %v1363 = vadd.f32 %v1358, %v1360
        %v1364 = vpack.c.bf16 %v1363, %v1362
        %v1365 = vld [vmem:[%s626] sm:$0xf]
        %v1366 = vld [vmem:[%s626 + $0x4] sm:$0xf]
        %v1367 = vld [vmem:[%s626 + $0x8] sm:$0xf]
        %v1368 = vld [vmem:[%s626 + $0xc] sm:$0xf]
        %v1369 = vld [vmem:[%s629] sm:$0x1]
        %v1371 = vperm.slane %v1369, 0
        %v1377 = vunpack.c.l.b16 %v1365
        %v1378 = vunpack.c.l.b16 %v1366
        %v1379 = vunpack.c.l.b16 %v1367
        %v1380 = vunpack.c.l.b16 %v1368
        %v1381 = vpack.c.b16 %v1378, %v1377
        %v1382 = vpack.c.b16 %v1380, %v1379
        %v1386 = vsel %vm654, %v1364, 0
        %1388 = vmatpush.bf16.msra.mxu0 0
        %1389 = vmatpush.bf16.msra.mxu0 0
        %1390 = vmatpush.bf16.msra.mxu0 0
        %1391 = vmatpush.bf16.msra.mxu0 0
        %1392 = vmatpush.bf16.msra.mxu0 0
        %1393 = vmatpush.bf16.msra.mxu0 0
        %1394 = vmatpush.bf16.msra.mxu0 %v1382
        %1395 = vmatpush.bf16.msra.mxu0 %v1381
        %1396 = vmatmul.bf16.gmra.mxu0 %v1386
        %v1397 = vpop.f32.mrf.mxu0
        %v1398 = vadd.f32 %v1371, %v1397
        %v1399 = vpop.f32.mrf.mxu0
        %v1400 = vadd.f32 %v1371, %v1399
        %1401 = vdwg.mxu0
        %v1402 = vpack.c.bf16 %v1398, %v1398
        %v1403 = vpack.c.bf16 %v1400, %v1400
        %v1404 = vunpack.c.l.bf16 %v1402
        %v1405 = vunpack.c.l.bf16 %v1403
        %v1406 = vmul.f32 %v1404, 1.703125
        %v1407 = vmul.f32 %v1405, 1.703125
        %v1408 = vpack.c.bf16 %v1406, %v1406
        %v1409 = vpack.c.bf16 %v1407, %v1407
        %v1410 = vxor.u32 %v1408, 2147516416
        %v1411 = vxor.u32 %v1409, 2147516416
        %v1412 = vunpack.c.l.bf16 %v1410
        %v1413 = vunpack.c.l.bf16 %v1411
        %v1414 = vmul.f32 %v1412, 1.442695
        %v1415 = vpow.pop %v1414
        %v1416 = vmul.f32 %v1413, 1.442695
        %v1417 = vpow.pop %v1416
        %v1418 = vpack.c.bf16 %v1415, %v1415
        %v1419 = vpack.c.bf16 %v1417, %v1417
        %v1420 = vunpack.c.l.bf16 %v1418
        %v1421 = vunpack.c.l.bf16 %v1419
        %v1422 = vadd.f32 %v1420, 1.0
        %v1423 = vadd.f32 %v1421, 1.0
        %v1424 = vpack.c.bf16 %v1422, %v1422
        %v1425 = vpack.c.bf16 %v1423, %v1423
        %v1426 = vunpack.c.h.bf16 1065369472
        %v1427 = vunpack.c.l.bf16 1065369472
        %v1428 = vunpack.c.h.bf16 %v1424
        %v1429 = vunpack.c.l.bf16 %v1424
        %v1430 = vrcp.pop %v1428
        %v1431 = vmul.f32 %v1426, %v1430
        %v1432 = vrcp.pop %v1429
        %v1433 = vmul.f32 %v1427, %v1432
        %v1434 = vpack.c.bf16 %v1431, %v1433
        %v1435 = vunpack.c.h.bf16 %v1425
        %v1436 = vunpack.c.l.bf16 %v1425
        %v1437 = vrcp.pop %v1435
        %v1438 = vmul.f32 %v1426, %v1437
        %v1439 = vrcp.pop %v1436
        %v1440 = vmul.f32 %v1427, %v1439
        %v1441 = vpack.c.bf16 %v1438, %v1440
        %v1442 = vunpack.c.l.bf16 %v1434
        %v1443 = vunpack.c.l.bf16 %v1441
        %v1444 = vmul.f32 %v1404, %v1442
        %v1445 = vmul.f32 %v1405, %v1443
        %v1446 = vpack.c.bf16 %v1445, %v1444
        %v1447 = vld [vmem:[%s634] sm:$0xf]
        %v1448 = vld [vmem:[%s634 + $0x4] sm:$0xf]
        %v1449 = vld [vmem:[%s634 + $0x8] sm:$0xf]
        %v1450 = vld [vmem:[%s634 + $0xc] sm:$0xf]
        %v1451 = vld [vmem:[%s634 + $0x10] sm:$0xf]
        %v1452 = vld [vmem:[%s634 + $0x14] sm:$0xf]
        %v1453 = vld [vmem:[%s634 + $0x18] sm:$0xf]
        %v1454 = vld [vmem:[%s634 + $0x1c] sm:$0xf]
        %v1455 = vld [vmem:[%s634 + $0x20] sm:$0xf]
        %v1456 = vld [vmem:[%s634 + $0x24] sm:$0xf]
        %v1457 = vld [vmem:[%s634 + $0x28] sm:$0xf]
        %v1458 = vld [vmem:[%s634 + $0x2c] sm:$0xf]
        %v1459 = vld [vmem:[%s634 + $0x30] sm:$0xf]
        %v1460 = vld [vmem:[%s634 + $0x34] sm:$0xf]
        %v1461 = vld [vmem:[%s634 + $0x38] sm:$0xf]
        %v1462 = vld [vmem:[%s634 + $0x3c] sm:$0xf]
        %v1463 = vld [vmem:[%s637] sm:$0x1]
        %v1465 = vperm.slane %v1463, 0
        %v1483 = vunpack.c.l.b16 %v1447
        %v1484 = vunpack.c.l.b16 %v1448
        %v1485 = vunpack.c.l.b16 %v1449
        %v1486 = vunpack.c.l.b16 %v1450
        %v1487 = vunpack.c.l.b16 %v1451
        %v1488 = vunpack.c.l.b16 %v1452
        %v1489 = vunpack.c.l.b16 %v1453
        %v1490 = vunpack.c.l.b16 %v1454
        %v1491 = vunpack.c.l.b16 %v1455
        %v1492 = vunpack.c.l.b16 %v1456
        %v1493 = vunpack.c.l.b16 %v1457
        %v1494 = vunpack.c.l.b16 %v1458
        %v1495 = vunpack.c.l.b16 %v1459
        %v1496 = vunpack.c.l.b16 %v1460
        %v1497 = vunpack.c.l.b16 %v1461
        %v1498 = vunpack.c.l.b16 %v1462
        %v1499 = vpack.c.b16 %v1484, %v1483
        %v1500 = vpack.c.b16 %v1486, %v1485
        %v1501 = vpack.c.b16 %v1488, %v1487
        %v1502 = vpack.c.b16 %v1490, %v1489
        %v1503 = vpack.c.b16 %v1492, %v1491
        %v1504 = vpack.c.b16 %v1494, %v1493
        %v1505 = vpack.c.b16 %v1496, %v1495
        %v1506 = vpack.c.b16 %v1498, %v1497
        %1515 = vmatpush.bf16.msra.mxu0 %v1506
        %1516 = vmatpush.bf16.msra.mxu0 %v1505
        %1517 = vmatpush.bf16.msra.mxu0 %v1504
        %1518 = vmatpush.bf16.msra.mxu0 %v1503
        %1519 = vmatpush.bf16.msra.mxu0 %v1502
        %1520 = vmatpush.bf16.msra.mxu0 %v1501
        %1521 = vmatpush.bf16.msra.mxu0 %v1500
        %1522 = vmatpush.bf16.msra.mxu0 %v1499
        %1523 = vmatmul.bf16.gmra.mxu0 %v1446
        %v1524 = vpop.f32.mrf.mxu0
        %v1525 = vadd.f32 %v1465, %v1524
        %v1526 = vpop.f32.mrf.mxu0
        %v1527 = vadd.f32 %v1465, %v1526
        %1528 = vdwg.mxu0
        %v1529 = vadd.f32 %v1302, %v1525
        %v1530 = vadd.f32 %v1303, %v1527
        %1531 = vst.msk [vmem:[#allocation3] sm:$0xff] %vm654, %v1529
        %1532 = vst.msk [vmem:[#allocation3 + $0x8] sm:$0xff] %vm654, %v1530
        // Predicated region
        $region77: #{tpu_custom_call.1} parent=71 // pred_check
          %p1533 = pneg %p393
        $region78: #{tpu_custom_call.1} parent=71 // pred_check_branch
          %1535 = sbr.rel (%p1533) target = $region80
        $region79: #{tpu_custom_call.1} parent=71 // pred_region
          %s1536 = smul.u32 2, %s29
          %1538 = vsyncadd [#allocation4], 0
          %s1539 = smul.addr %s1536, 8
          %s1540 = scalar_lea.hbm %s13, %s1539
          %s1541 = sshll.u32 [#allocation3], 4
          %s1542 = int_to_ptr.vmem [resolvable:$true] %s1541
          %s1543 = sshll.u32 %s1540, 4
          %s1544 = int_to_ptr.hbm [resolvable:$true] %s1543
          %1549 = dma.vmem_to_hbm [thread:$0]  %s1542, 256, %s1544, [#allocation4], 128, 128, 8
        $region80: #{tpu_custom_call.1} parent=71 // pred_fallthru
          _
        // Predicated region
        $region81: #{tpu_custom_call.1} parent=71 // pred_check
          %p1550 = pneg %p393
        $region82: #{tpu_custom_call.1} parent=71 // pred_check_branch
          %1552 = sbr.rel (%p1550) target = $region84
        $region83: #{tpu_custom_call.1} parent=71 // pred_region
          %1554 = dma.done [#allocation4], 256
        $region84: #{tpu_custom_call.1} parent=71 // pred_fallthru
          _
      $region72: #{tpu_custom_call.1} parent=5 // pred_fallthru
        _
      %p1555 = scmp.le.s32.totalorder 2, %s20
      // Predicated region
      $region85: #{tpu_custom_call.1} parent=5 // pred_check
        %p1556 = pneg %p1555
      $region86: #{tpu_custom_call.1} parent=5 // pred_check_branch
        %1558 = sbr.rel (%p1556) target = $region88
      $region87: #{tpu_custom_call.1} parent=5 // pred_region
        %s1559 = ssub.s32 %s20, 2
      $region88: #{tpu_custom_call.1} parent=5 // pred_fallthru
        _
    $region6: #{tpu_custom_call.1} parent=1 // loop_footer
      %s24 = sadd.s32 1, %s20
    $region7: #{tpu_custom_call.1} parent=1 // loop_footer_branch
      %19 = sbr.rel target = $region3
    $region8: #{tpu_custom_call.1} parent=1 // loop_exit
      _
    %1560 = vsyncpa [#allocation4], 1
    %s1561 = scalar_lea.sflag [#allocation4], 1
    %1562 = vsyncpa %s1561, 1

</llo_original>
